<compile_context>
chip_gen: v5e
topology: v5e:2x2
jax: 0.10.0
libtpu: 0.0.40
codegen_flags: <defaults>
</compile_context>

<pallas_src>
import functools

import jax
import jax.numpy as jnp
from jax import lax
from jax.experimental import pallas as pl
from jax.experimental.pallas import tpu as pltpu

# ----------------------------- renderer config ------------------------------
MIN_DIST = 0.0003          # self.MIN_DIST
STEP_SIZE = 0.8            # args.step_size
CAMERA_CLAMP = (0.0, 5.0)  # args.camera_clamp
NUM_MARCH_STEPS = 16       # sphere-tracing iterations inside the tracer
HIDDEN = 32                # SDF MLP hidden width (synthetic sdf_net)

# Packed output slab rows (exactly one 8-sublane tile).
ROW_X = 0          # rows 0..2 : surface point x
ROW_N = 3          # rows 3..5 : normal
ROW_DEPTH = 6      # row 6     : depth
ROW_HIT = 7        # row 7     : hit mask (float {0,1})
OUT_ROWS = 8


# ------------------------------ Pallas kernel -------------------------------
def _render_kernel(ro_ref, rd_ref,
                   w1_ref, w1t_ref, b1_ref,
                   w2_ref, w2t_ref, b2_ref,
                   w3c_ref, b3_ref,
                   out_ref):
    ro = ro_ref[...]        # (3, T) f32, rays on the lane axis
    rd = rd_ref[...]        # (3, T)
    w1 = w1_ref[...]        # (H, 3)  input layer  (forward)
    w1t = w1t_ref[...]      # (3, H)  input layer  (backprop)
    b1 = b1_ref[...]        # (H, 1)
    w2 = w2_ref[...]        # (H, H)  hidden layer (forward)
    w2t = w2t_ref[...]      # (H, H)  hidden layer (backprop)
    b2 = b2_ref[...]        # (H, 1)
    w3c = w3c_ref[...]      # (H, 1)  output layer as a column
    b3 = b3_ref[...]        # (1, 1)
    T = ro.shape[1]

    # Input layer hoisted out of the march loop (affine in t): z1 = A + t * B.
    A = jnp.dot(w1, ro, preferred_element_type=jnp.float32) + b1    # (H, T)
    B = jnp.dot(w1, rd, preferred_element_type=jnp.float32)         # (H, T)

    def pre_activations(t):
        z1 = A + t * B                                               # VPU only
        h1 = jnp.maximum(z1, 0.0)
        z2 = jnp.dot(w2, h1, preferred_element_type=jnp.float32) + b2  # MXU
        return z1, z2

    def sdf_value(z2):
        h2 = jnp.maximum(z2, 0.0)
        # (1,H)@(H,T) output layer as VPU multiply + sublane (XLU) reduce,
        # keeping it off the serialized MXU critical path.
        return jnp.sum(w3c * h2, axis=0, keepdims=True) + b3         # (1, T)

    t0 = jnp.full((1, T), CAMERA_CLAMP[0], jnp.float32)
    hit0 = jnp.zeros((1, T), jnp.float32)

    # Sphere tracing: march only rays that have not yet hit the surface.
    def march(_, carry):
        t, hit = carry
        _, z2 = pre_activations(t)
        d = sdf_value(z2)                                            # (1, T)
        new_hit = jnp.where(jnp.abs(d) < MIN_DIST, 1.0, hit)
        t_adv = jnp.clip(t + STEP_SIZE * d, CAMERA_CLAMP[0], CAMERA_CLAMP[1])
        t = jnp.where(new_hit > 0.0, t, t_adv)
        return t, new_hit

    t, hit = lax.fori_loop(0, NUM_MARCH_STEPS, march, (t0, hit0),
                           unroll=True)

    x = ro + t * rd                                                  # (3, T)

    # Normals: exact analytic gradient of the ReLU MLP (backprop):
    #   g = W1^T (m1 * (W2^T (m2 * W3^T)))
    z1, z2 = pre_activations(t)
    m1 = z1 > 0.0
    m2 = z2 > 0.0
    v2 = jnp.where(m2, w3c, 0.0)                                     # (H, T)
    v1 = jnp.where(m1,
                   jnp.dot(w2t, v2, preferred_element_type=jnp.float32),
                   0.0)                                              # (H, T)
    g = jnp.dot(w1t, v1, preferred_element_type=jnp.float32)         # (3, T)
    inv_norm = lax.rsqrt(jnp.sum(g * g, axis=0, keepdims=True) + 1e-12)

    # Lane-dense (8, T) output slab: x | normal | depth | hit.
    out_ref[ROW_X:ROW_X + 3, :] = x
    out_ref[ROW_N:ROW_N + 3, :] = g * inv_norm
    out_ref[ROW_DEPTH:ROW_DEPTH + 1, :] = t
    out_ref[ROW_HIT:ROW_HIT + 1, :] = hit


# ------------------------------ kernel wrapper -------------------------------
@functools.partial(jax.jit, static_argnames=("max_tile",))
def render_pallas(ray_o_t, ray_d_t, params, max_tile=512):
    """Runs the sphere tracer + shading buffers on TPU via Pallas.

    ray_o_t, ray_d_t: (3, N) lane-major rays.
    Returns a packed (8, N) f32 slab:
      rows 0..2 surface point, 3..5 normal, 6 depth, 7 hit.
    """
    n = ray_o_t.shape[1]
    w1, b1, w2, b2, w3, b3 = params
    h = w1.shape[1]

    # Tile selection: largest lane tile that still yields a grid of >= 2 steps
    # (so "parallel" can shard across both v7x TensorCores), capped at
    # max_tile so the (H, T) hidden activations stay near the 64-vreg budget.
    half = -(-n // 2)
    tile = min(max_tile, max(128, -(-half // 128) * 128))

    n_pad = -(-n // tile) * tile
    if n_pad != n:
        pad = n_pad - n
        ray_o_t = jnp.pad(ray_o_t, ((0, 0), (0, pad)))
        ray_d_t = jnp.pad(ray_d_t, ((0, 0), (0, pad)))

    ro = ray_o_t.astype(jnp.float32)          # (3, N_pad)
    rd = ray_d_t.astype(jnp.float32)          # (3, N_pad)
    w1k = w1.T                                # (H, 3)  forward
    w1kt = w1                                 # (3, H)  backprop
    b1c = b1.T                                # (H, 1)
    w2k = w2.T                                # (H, H)  forward
    w2kt = w2                                 # (H, H)  backprop
    b2c = b2.T                                # (H, 1)
    w3c = w3                                  # (H, 1)
    b3c = b3                                  # (1, 1)

    ray_spec = pl.BlockSpec((3, tile), lambda i: (0, i))
    full = lambda shape: pl.BlockSpec(shape, lambda i: (0, 0))

    out = pl.pallas_call(
        _render_kernel,
        out_shape=jax.ShapeDtypeStruct((OUT_ROWS, n_pad), jnp.float32),
        grid_spec=pltpu.PrefetchScalarGridSpec(
            num_scalar_prefetch=0,
            grid=(n_pad // tile,),
            in_specs=[ray_spec, ray_spec,
                      full((h, 3)), full((3, h)), full((h, 1)),
                      full((h, h)), full((h, h)), full((h, 1)),
                      full((h, 1)), full((1, 1))],
            out_specs=pl.BlockSpec((OUT_ROWS, tile), lambda i: (0, i)),
        ),
        compiler_params=pltpu.CompilerParams(
            dimension_semantics=("parallel",)),
    )(ro, rd, w1k, w1kt, b1c, w2k, w2kt, b2c, w3c, b3c)

    return out[:, :n]


# ------------------------------- camera glue --------------------------------
def look_at(f, t, width, height, fv=30.0):
    """Perspective ray generation in lane-major (3, N) layout (plain-JAX glue)."""
    f = jnp.asarray(f, jnp.float32)
    t = jnp.asarray(t, jnp.float32)
    fwd = f - t
    fwd = fwd / (jnp.linalg.norm(fwd) + 1e-12)
    world_up = jnp.array([0.0, 1.0, 0.0], jnp.float32)
    right = jnp.cross(world_up, fwd)
    right = right / (jnp.linalg.norm(right) + 1e-12)
    up = jnp.cross(fwd, right)

    xs = (jnp.arange(width, dtype=jnp.float32) + 0.5) / width * 2.0 - 1.0
    ys = (jnp.arange(height, dtype=jnp.float32) + 0.5) / height * 2.0 - 1.0
    xx, yy = jnp.meshgrid(xs, ys, indexing="ij")          # (W, H)
    tan = jnp.tan(jnp.radians(fv) / 2.0)

    xxf = xx.reshape(1, -1)                                # (1, N)
    yyf = yy.reshape(1, -1)
    d = (-fwd[:, None]
         + tan * right[:, None] * xxf
         + tan * up[:, None] * yyf)                        # (3, N)
    d = d / (jnp.linalg.norm(d, axis=0, keepdims=True) + 1e-12)
    o = jnp.broadcast_to(f[:, None], d.shape)
    return o.astype(jnp.float32), d.astype(jnp.float32)


def init_sdf_params(key, hidden=HIDDEN):
    """Deterministic synthetic sdf_net parameters (3 -> H -> H -> 1 MLP)."""
    k1, k2, k3 = jax.random.split(key, 3)
    w1 = jax.random.normal(k1, (3, hidden), jnp.float32) * 0.5
    b1 = jnp.zeros((1, hidden), jnp.float32)
    w2 = jax.random.normal(k2, (hidden, hidden), jnp.float32) * (1.0 / hidden ** 0.5)
    b2 = jnp.zeros((1, hidden), jnp.float32)
    w3 = jax.random.normal(k3, (hidden, 1), jnp.float32) * (1.0 / hidden ** 0.5)
    # Bias the SDF so rays start outside the level set (sphere-like init).
    b3 = jnp.full((1, 1), 0.25, jnp.float32)
    return (w1, b1, w2, b2, w3, b3)


def renderer_forward(params, f, t, width, height, fv=30.0, mm=None):
    """Renderer.forward: rays -> tracer -> RenderBuffer, reshaped to (W,H,C)."""
    ray_o, ray_d = look_at(f, t, width, height, fv=fv)     # (3, N) each
    if mm is not None:
        # PyTorch applies `ray @ mm` on (N, 3); in (3, N) layout that is mm.T @ ray.
        # TODO(synk): a model matrix with translation would need to treat ray_o
        # (points) and ray_d (directions) differently; only 3x3 rotations here.
        mm = jnp.asarray(mm, jnp.float32)
        ray_o = mm.T @ ray_o
        ray_d = mm.T @ ray_d

    slab = render_pallas(ray_o, ray_d, params)              # (8, N)

    def cn_to_whc(a):                                       # (3, N) -> (W, H, 3)
        return jnp.moveaxis(a.reshape(3, width, height), 0, -1)

    depth = slab[ROW_DEPTH].reshape(width, height, 1)
    rb = {
        "x": cn_to_whc(slab[ROW_X:ROW_X + 3]),
        "normal": cn_to_whc(slab[ROW_N:ROW_N + 3]),
        "depth": depth,
        "hit": slab[ROW_HIT].reshape(width, height, 1),
        # rb.relative_depth = clip(depth, 0, clamp[1]) / clamp[1]  (wrapper-side
        # so the kernel slab stays exactly one 8-sublane tile).
        "relative_depth": jnp.clip(depth, 0.0, CAMERA_CLAMP[1]) / CAMERA_CLAMP[1],
        "view": cn_to_whc(ray_d),                           # rb.view = ray_d
    }
    # TODO(synk): args.shadow / args.ao / matcap shading branches depend on the
    # external tracer & matcap sampler and are not part of the default forward.
    return rb


# ---------------------------------- main -------------------------------------
if __name__ == "__main__":
    key = jax.random.PRNGKey(0)
    params = init_sdf_params(key)

    width, height = 16, 16                          # args.render_res
    mm = jnp.eye(3, dtype=jnp.float32)              # model transform (identity)

    rb = renderer_forward(params, f=[0.0, 0.0, 1.0], t=[0.0, 0.0, 0.0],
                          width=width, height=height, fv=30.0, mm=mm)
    jax.block_until_ready(rb)

    assert rb["x"].shape == (width, height, 3)
    assert rb["depth"].shape == (width, height, 1)
    assert rb["hit"].shape == (width, height, 1)
    assert rb["normal"].shape == (width, height, 3)
    assert rb["relative_depth"].shape == (width, height, 1)
    assert rb["view"].shape == (width, height, 3)
    assert bool(jnp.all(jnp.isfinite(rb["x"])))
    assert bool(jnp.all(jnp.isfinite(rb["normal"])))
    assert bool(jnp.all((rb["relative_depth"] >= 0.0) & (rb["relative_depth"] <= 1.0)))

    print("KERNEL_OK")
</pallas_src>

<mosaic_0001>
module attributes {stable_mosaic.version = 11 : i64} {
  func.func @_render_kernel(%arg0: i32, %arg1: memref<3x128xf32, #tpu.memory_space<vmem>>, %arg2: memref<3x128xf32, #tpu.memory_space<vmem>>, %arg3: memref<32x3xf32, #tpu.memory_space<vmem>>, %arg4: memref<3x32xf32, #tpu.memory_space<vmem>>, %arg5: memref<32x1xf32, #tpu.memory_space<vmem>>, %arg6: memref<32x32xf32, #tpu.memory_space<vmem>>, %arg7: memref<32x32xf32, #tpu.memory_space<vmem>>, %arg8: memref<32x1xf32, #tpu.memory_space<vmem>>, %arg9: memref<32x1xf32, #tpu.memory_space<vmem>>, %arg10: memref<1x1xf32, #tpu.memory_space<vmem>>, %arg11: memref<8x128xf32, #tpu.memory_space<vmem>>) attributes {dimension_semantics = [#tpu.dimension_semantics<parallel>], iteration_bounds = array<i64: 2>, scalar_prefetch = 0 : i64, scratch_operands = 0 : i64, tpu.core_type = #tpu.core_type<tc>, window_params = [{transform_indices = @transform_0, window_bounds = array<i64: 3, 128>}, {transform_indices = @transform_1, window_bounds = array<i64: 3, 128>}, {pipeline_mode = #tpu.pipeline_mode<synchronous>, transform_indices = @transform_2, window_bounds = array<i64: 32, 3>}, {pipeline_mode = #tpu.pipeline_mode<synchronous>, transform_indices = @transform_3, window_bounds = array<i64: 3, 32>}, {pipeline_mode = #tpu.pipeline_mode<synchronous>, transform_indices = @transform_4, window_bounds = array<i64: 32, 1>}, {pipeline_mode = #tpu.pipeline_mode<synchronous>, transform_indices = @transform_5, window_bounds = array<i64: 32, 32>}, {pipeline_mode = #tpu.pipeline_mode<synchronous>, transform_indices = @transform_6, window_bounds = array<i64: 32, 32>}, {pipeline_mode = #tpu.pipeline_mode<synchronous>, transform_indices = @transform_7, window_bounds = array<i64: 32, 1>}, {pipeline_mode = #tpu.pipeline_mode<synchronous>, transform_indices = @transform_8, window_bounds = array<i64: 32, 1>}, {pipeline_mode = #tpu.pipeline_mode<synchronous>, transform_indices = @transform_9, window_bounds = array<i64: 1, 1>}, {transform_indices = @transform_10, window_bounds = array<i64: 8, 128>}]} {
    %c0 = arith.constant 0 : index
    %c0_0 = arith.constant 0 : index
    %0 = vector.load %arg1[%c0, %c0_0] : memref<3x128xf32, #tpu.memory_space<vmem>>, vector<3x128xf32>
    %c0_1 = arith.constant 0 : index
    %c0_2 = arith.constant 0 : index
    %1 = vector.load %arg2[%c0_1, %c0_2] : memref<3x128xf32, #tpu.memory_space<vmem>>, vector<3x128xf32>
    %c0_3 = arith.constant 0 : index
    %c0_4 = arith.constant 0 : index
    %2 = vector.load %arg3[%c0_3, %c0_4] : memref<32x3xf32, #tpu.memory_space<vmem>>, vector<32x3xf32>
    %c0_5 = arith.constant 0 : index
    %c0_6 = arith.constant 0 : index
    %3 = vector.load %arg4[%c0_5, %c0_6] : memref<3x32xf32, #tpu.memory_space<vmem>>, vector<3x32xf32>
    %c0_7 = arith.constant 0 : index
    %c0_8 = arith.constant 0 : index
    %4 = vector.load %arg5[%c0_7, %c0_8] : memref<32x1xf32, #tpu.memory_space<vmem>>, vector<32x1xf32>
    %c0_9 = arith.constant 0 : index
    %c0_10 = arith.constant 0 : index
    %5 = vector.load %arg6[%c0_9, %c0_10] : memref<32x32xf32, #tpu.memory_space<vmem>>, vector<32x32xf32>
    %c0_11 = arith.constant 0 : index
    %c0_12 = arith.constant 0 : index
    %6 = vector.load %arg7[%c0_11, %c0_12] : memref<32x32xf32, #tpu.memory_space<vmem>>, vector<32x32xf32>
    %c0_13 = arith.constant 0 : index
    %c0_14 = arith.constant 0 : index
    %7 = vector.load %arg8[%c0_13, %c0_14] : memref<32x1xf32, #tpu.memory_space<vmem>>, vector<32x1xf32>
    %c0_15 = arith.constant 0 : index
    %c0_16 = arith.constant 0 : index
    %8 = vector.load %arg9[%c0_15, %c0_16] : memref<32x1xf32, #tpu.memory_space<vmem>>, vector<32x1xf32>
    %c0_17 = arith.constant 0 : index
    %c0_18 = arith.constant 0 : index
    %9 = vector.load %arg10[%c0_17, %c0_18] : memref<1x1xf32, #tpu.memory_space<vmem>>, vector<1x1xf32>
    %cst = arith.constant dense<0.000000e+00> : vector<32x128xf32>
    %10 = tpu.matmul %2, %0, %cst {dimension_numbers = #tpu.dot_dimension_numbers<[1], [0], [0], [1], [0, 0, 1, 1], [], []>} : vector<32x3xf32>, vector<3x128xf32>, vector<32x128xf32> -> vector<32x128xf32>
    %11 = vector.broadcast %4 : vector<32x1xf32> to vector<32x128xf32>
    %12 = arith.addf %10, %11 : vector<32x128xf32>
    %cst_19 = arith.constant dense<0.000000e+00> : vector<32x128xf32>
    %13 = tpu.matmul %2, %1, %cst_19 {dimension_numbers = #tpu.dot_dimension_numbers<[1], [0], [0], [1], [0, 0, 1, 1], [], []>} : vector<32x3xf32>, vector<3x128xf32>, vector<32x128xf32> -> vector<32x128xf32>
    %cst_20 = arith.constant 0.000000e+00 : f32
    %14 = vector.broadcast %cst_20 : f32 to vector<1x128xf32>
    %cst_21 = arith.constant 0.000000e+00 : f32
    %15 = vector.broadcast %cst_21 : f32 to vector<1x128xf32>
    %c0_i32 = arith.constant 0 : i32
    %16 = vector.broadcast %14 : vector<1x128xf32> to vector<32x128xf32>
    %17 = arith.mulf %16, %13 : vector<32x128xf32>
    %18 = arith.addf %12, %17 : vector<32x128xf32>
    %cst_22 = arith.constant 0.000000e+00 : f32
    %19 = vector.broadcast %cst_22 : f32 to vector<32x128xf32>
    %20 = arith.maximumf %18, %19 : vector<32x128xf32>
    %cst_23 = arith.constant dense<0.000000e+00> : vector<32x128xf32>
    %21 = tpu.matmul %5, %20, %cst_23 {dimension_numbers = #tpu.dot_dimension_numbers<[1], [0], [0], [1], [0, 0, 1, 1], [], []>} : vector<32x32xf32>, vector<32x128xf32>, vector<32x128xf32> -> vector<32x128xf32>
    %22 = vector.broadcast %7 : vector<32x1xf32> to vector<32x128xf32>
    %23 = arith.addf %21, %22 : vector<32x128xf32>
    %cst_24 = arith.constant 0.000000e+00 : f32
    %24 = vector.broadcast %cst_24 : f32 to vector<32x128xf32>
    %25 = arith.maximumf %23, %24 : vector<32x128xf32>
    %26 = vector.broadcast %8 : vector<32x1xf32> to vector<32x128xf32>
    %27 = arith.mulf %26, %25 : vector<32x128xf32>
    %cst_25 = arith.constant dense<0.000000e+00> : vector<128xf32>
    %28 = vector.multi_reduction <add>, %27, %cst_25 [0] : vector<32x128xf32> to vector<128xf32>
    %29 = vector.shape_cast %28 : vector<128xf32> to vector<1x128xf32>
    %30 = vector.broadcast %9 : vector<1x1xf32> to vector<1x128xf32>
    %31 = arith.addf %29, %30 : vector<1x128xf32>
    %32 = math.absf %31 : vector<1x128xf32>
    %cst_26 = arith.constant 3.000000e-04 : f32
    %33 = vector.broadcast %cst_26 : f32 to vector<1x128xf32>
    %34 = arith.cmpf olt, %32, %33 : vector<1x128xf32>
    %cst_27 = arith.constant 1.000000e+00 : f32
    %35 = vector.broadcast %cst_27 : f32 to vector<1x128xf32>
    %36 = arith.select %34, %35, %15 : vector<1x128xi1>, vector<1x128xf32>
    %cst_28 = arith.constant 8.000000e-01 : f32
    %37 = vector.broadcast %cst_28 : f32 to vector<1x128xf32>
    %38 = arith.mulf %37, %31 : vector<1x128xf32>
    %39 = arith.addf %14, %38 : vector<1x128xf32>
    %cst_29 = arith.constant 0.000000e+00 : f32
    %cst_30 = arith.constant 5.000000e+00 : f32
    %40 = vector.broadcast %cst_29 : f32 to vector<1x128xf32>
    %41 = arith.maximumf %40, %39 : vector<1x128xf32>
    %42 = vector.broadcast %cst_30 : f32 to vector<1x128xf32>
    %43 = arith.minimumf %42, %41 : vector<1x128xf32>
    %cst_31 = arith.constant 0.000000e+00 : f32
    %44 = vector.broadcast %cst_31 : f32 to vector<1x128xf32>
    %45 = arith.cmpf ogt, %36, %44 : vector<1x128xf32>
    %46 = arith.select %45, %14, %43 : vector<1x128xi1>, vector<1x128xf32>
    %c1_i32 = arith.constant 1 : i32
    %47 = vector.broadcast %46 : vector<1x128xf32> to vector<32x128xf32>
    %48 = arith.mulf %47, %13 : vector<32x128xf32>
    %49 = arith.addf %12, %48 : vector<32x128xf32>
    %cst_32 = arith.constant 0.000000e+00 : f32
    %50 = vector.broadcast %cst_32 : f32 to vector<32x128xf32>
    %51 = arith.maximumf %49, %50 : vector<32x128xf32>
    %cst_33 = arith.constant dense<0.000000e+00> : vector<32x128xf32>
    %52 = tpu.matmul %5, %51, %cst_33 {dimension_numbers = #tpu.dot_dimension_numbers<[1], [0], [0], [1], [0, 0, 1, 1], [], []>} : vector<32x32xf32>, vector<32x128xf32>, vector<32x128xf32> -> vector<32x128xf32>
    %53 = vector.broadcast %7 : vector<32x1xf32> to vector<32x128xf32>
    %54 = arith.addf %52, %53 : vector<32x128xf32>
    %cst_34 = arith.constant 0.000000e+00 : f32
    %55 = vector.broadcast %cst_34 : f32 to vector<32x128xf32>
    %56 = arith.maximumf %54, %55 : vector<32x128xf32>
    %57 = vector.broadcast %8 : vector<32x1xf32> to vector<32x128xf32>
    %58 = arith.mulf %57, %56 : vector<32x128xf32>
    %cst_35 = arith.constant dense<0.000000e+00> : vector<128xf32>
    %59 = vector.multi_reduction <add>, %58, %cst_35 [0] : vector<32x128xf32> to vector<128xf32>
    %60 = vector.shape_cast %59 : vector<128xf32> to vector<1x128xf32>
    %61 = vector.broadcast %9 : vector<1x1xf32> to vector<1x128xf32>
    %62 = arith.addf %60, %61 : vector<1x128xf32>
    %63 = math.absf %62 : vector<1x128xf32>
    %cst_36 = arith.constant 3.000000e-04 : f32
    %64 = vector.broadcast %cst_36 : f32 to vector<1x128xf32>
    %65 = arith.cmpf olt, %63, %64 : vector<1x128xf32>
    %cst_37 = arith.constant 1.000000e+00 : f32
    %66 = vector.broadcast %cst_37 : f32 to vector<1x128xf32>
    %67 = arith.select %65, %66, %36 : vector<1x128xi1>, vector<1x128xf32>
    %cst_38 = arith.constant 8.000000e-01 : f32
    %68 = vector.broadcast %cst_38 : f32 to vector<1x128xf32>
    %69 = arith.mulf %68, %62 : vector<1x128xf32>
    %70 = arith.addf %46, %69 : vector<1x128xf32>
    %cst_39 = arith.constant 0.000000e+00 : f32
    %cst_40 = arith.constant 5.000000e+00 : f32
    %71 = vector.broadcast %cst_39 : f32 to vector<1x128xf32>
    %72 = arith.maximumf %71, %70 : vector<1x128xf32>
    %73 = vector.broadcast %cst_40 : f32 to vector<1x128xf32>
    %74 = arith.minimumf %73, %72 : vector<1x128xf32>
    %cst_41 = arith.constant 0.000000e+00 : f32
    %75 = vector.broadcast %cst_41 : f32 to vector<1x128xf32>
    %76 = arith.cmpf ogt, %67, %75 : vector<1x128xf32>
    %77 = arith.select %76, %46, %74 : vector<1x128xi1>, vector<1x128xf32>
    %c2_i32 = arith.constant 2 : i32
    %78 = vector.broadcast %77 : vector<1x128xf32> to vector<32x128xf32>
    %79 = arith.mulf %78, %13 : vector<32x128xf32>
    %80 = arith.addf %12, %79 : vector<32x128xf32>
    %cst_42 = arith.constant 0.000000e+00 : f32
    %81 = vector.broadcast %cst_42 : f32 to vector<32x128xf32>
    %82 = arith.maximumf %80, %81 : vector<32x128xf32>
    %cst_43 = arith.constant dense<0.000000e+00> : vector<32x128xf32>
    %83 = tpu.matmul %5, %82, %cst_43 {dimension_numbers = #tpu.dot_dimension_numbers<[1], [0], [0], [1], [0, 0, 1, 1], [], []>} : vector<32x32xf32>, vector<32x128xf32>, vector<32x128xf32> -> vector<32x128xf32>
    %84 = vector.broadcast %7 : vector<32x1xf32> to vector<32x128xf32>
    %85 = arith.addf %83, %84 : vector<32x128xf32>
    %cst_44 = arith.constant 0.000000e+00 : f32
    %86 = vector.broadcast %cst_44 : f32 to vector<32x128xf32>
    %87 = arith.maximumf %85, %86 : vector<32x128xf32>
    %88 = vector.broadcast %8 : vector<32x1xf32> to vector<32x128xf32>
    %89 = arith.mulf %88, %87 : vector<32x128xf32>
    %cst_45 = arith.constant dense<0.000000e+00> : vector<128xf32>
    %90 = vector.multi_reduction <add>, %89, %cst_45 [0] : vector<32x128xf32> to vector<128xf32>
    %91 = vector.shape_cast %90 : vector<128xf32> to vector<1x128xf32>
    %92 = vector.broadcast %9 : vector<1x1xf32> to vector<1x128xf32>
    %93 = arith.addf %91, %92 : vector<1x128xf32>
    %94 = math.absf %93 : vector<1x128xf32>
    %cst_46 = arith.constant 3.000000e-04 : f32
    %95 = vector.broadcast %cst_46 : f32 to vector<1x128xf32>
    %96 = arith.cmpf olt, %94, %95 : vector<1x128xf32>
    %cst_47 = arith.constant 1.000000e+00 : f32
    %97 = vector.broadcast %cst_47 : f32 to vector<1x128xf32>
    %98 = arith.select %96, %97, %67 : vector<1x128xi1>, vector<1x128xf32>
    %cst_48 = arith.constant 8.000000e-01 : f32
    %99 = vector.broadcast %cst_48 : f32 to vector<1x128xf32>
    %100 = arith.mulf %99, %93 : vector<1x128xf32>
    %101 = arith.addf %77, %100 : vector<1x128xf32>
    %cst_49 = arith.constant 0.000000e+00 : f32
    %cst_50 = arith.constant 5.000000e+00 : f32
    %102 = vector.broadcast %cst_49 : f32 to vector<1x128xf32>
    %103 = arith.maximumf %102, %101 : vector<1x128xf32>
    %104 = vector.broadcast %cst_50 : f32 to vector<1x128xf32>
    %105 = arith.minimumf %104, %103 : vector<1x128xf32>
    %cst_51 = arith.constant 0.000000e+00 : f32
    %106 = vector.broadcast %cst_51 : f32 to vector<1x128xf32>
    %107 = arith.cmpf ogt, %98, %106 : vector<1x128xf32>
    %108 = arith.select %107, %77, %105 : vector<1x128xi1>, vector<1x128xf32>
    %c3_i32 = arith.constant 3 : i32
    %109 = vector.broadcast %108 : vector<1x128xf32> to vector<32x128xf32>
    %110 = arith.mulf %109, %13 : vector<32x128xf32>
    %111 = arith.addf %12, %110 : vector<32x128xf32>
    %cst_52 = arith.constant 0.000000e+00 : f32
    %112 = vector.broadcast %cst_52 : f32 to vector<32x128xf32>
    %113 = arith.maximumf %111, %112 : vector<32x128xf32>
    %cst_53 = arith.constant dense<0.000000e+00> : vector<32x128xf32>
    %114 = tpu.matmul %5, %113, %cst_53 {dimension_numbers = #tpu.dot_dimension_numbers<[1], [0], [0], [1], [0, 0, 1, 1], [], []>} : vector<32x32xf32>, vector<32x128xf32>, vector<32x128xf32> -> vector<32x128xf32>
    %115 = vector.broadcast %7 : vector<32x1xf32> to vector<32x128xf32>
    %116 = arith.addf %114, %115 : vector<32x128xf32>
    %cst_54 = arith.constant 0.000000e+00 : f32
    %117 = vector.broadcast %cst_54 : f32 to vector<32x128xf32>
    %118 = arith.maximumf %116, %117 : vector<32x128xf32>
    %119 = vector.broadcast %8 : vector<32x1xf32> to vector<32x128xf32>
    %120 = arith.mulf %119, %118 : vector<32x128xf32>
    %cst_55 = arith.constant dense<0.000000e+00> : vector<128xf32>
    %121 = vector.multi_reduction <add>, %120, %cst_55 [0] : vector<32x128xf32> to vector<128xf32>
    %122 = vector.shape_cast %121 : vector<128xf32> to vector<1x128xf32>
    %123 = vector.broadcast %9 : vector<1x1xf32> to vector<1x128xf32>
    %124 = arith.addf %122, %123 : vector<1x128xf32>
    %125 = math.absf %124 : vector<1x128xf32>
    %cst_56 = arith.constant 3.000000e-04 : f32
    %126 = vector.broadcast %cst_56 : f32 to vector<1x128xf32>
    %127 = arith.cmpf olt, %125, %126 : vector<1x128xf32>
    %cst_57 = arith.constant 1.000000e+00 : f32
    %128 = vector.broadcast %cst_57 : f32 to vector<1x128xf32>
    %129 = arith.select %127, %128, %98 : vector<1x128xi1>, vector<1x128xf32>
    %cst_58 = arith.constant 8.000000e-01 : f32
    %130 = vector.broadcast %cst_58 : f32 to vector<1x128xf32>
    %131 = arith.mulf %130, %124 : vector<1x128xf32>
    %132 = arith.addf %108, %131 : vector<1x128xf32>
    %cst_59 = arith.constant 0.000000e+00 : f32
    %cst_60 = arith.constant 5.000000e+00 : f32
    %133 = vector.broadcast %cst_59 : f32 to vector<1x128xf32>
    %134 = arith.maximumf %133, %132 : vector<1x128xf32>
    %135 = vector.broadcast %cst_60 : f32 to vector<1x128xf32>
    %136 = arith.minimumf %135, %134 : vector<1x128xf32>
    %cst_61 = arith.constant 0.000000e+00 : f32
    %137 = vector.broadcast %cst_61 : f32 to vector<1x128xf32>
    %138 = arith.cmpf ogt, %129, %137 : vector<1x128xf32>
    %139 = arith.select %138, %108, %136 : vector<1x128xi1>, vector<1x128xf32>
    %c4_i32 = arith.constant 4 : i32
    %140 = vector.broadcast %139 : vector<1x128xf32> to vector<32x128xf32>
    %141 = arith.mulf %140, %13 : vector<32x128xf32>
    %142 = arith.addf %12, %141 : vector<32x128xf32>
    %cst_62 = arith.constant 0.000000e+00 : f32
    %143 = vector.broadcast %cst_62 : f32 to vector<32x128xf32>
    %144 = arith.maximumf %142, %143 : vector<32x128xf32>
    %cst_63 = arith.constant dense<0.000000e+00> : vector<32x128xf32>
    %145 = tpu.matmul %5, %144, %cst_63 {dimension_numbers = #tpu.dot_dimension_numbers<[1], [0], [0], [1], [0, 0, 1, 1], [], []>} : vector<32x32xf32>, vector<32x128xf32>, vector<32x128xf32> -> vector<32x128xf32>
    %146 = vector.broadcast %7 : vector<32x1xf32> to vector<32x128xf32>
    %147 = arith.addf %145, %146 : vector<32x128xf32>
    %cst_64 = arith.constant 0.000000e+00 : f32
    %148 = vector.broadcast %cst_64 : f32 to vector<32x128xf32>
    %149 = arith.maximumf %147, %148 : vector<32x128xf32>
    %150 = vector.broadcast %8 : vector<32x1xf32> to vector<32x128xf32>
    %151 = arith.mulf %150, %149 : vector<32x128xf32>
    %cst_65 = arith.constant dense<0.000000e+00> : vector<128xf32>
    %152 = vector.multi_reduction <add>, %151, %cst_65 [0] : vector<32x128xf32> to vector<128xf32>
    %153 = vector.shape_cast %152 : vector<128xf32> to vector<1x128xf32>
    %154 = vector.broadcast %9 : vector<1x1xf32> to vector<1x128xf32>
    %155 = arith.addf %153, %154 : vector<1x128xf32>
    %156 = math.absf %155 : vector<1x128xf32>
    %cst_66 = arith.constant 3.000000e-04 : f32
    %157 = vector.broadcast %cst_66 : f32 to vector<1x128xf32>
    %158 = arith.cmpf olt, %156, %157 : vector<1x128xf32>
    %cst_67 = arith.constant 1.000000e+00 : f32
    %159 = vector.broadcast %cst_67 : f32 to vector<1x128xf32>
    %160 = arith.select %158, %159, %129 : vector<1x128xi1>, vector<1x128xf32>
    %cst_68 = arith.constant 8.000000e-01 : f32
    %161 = vector.broadcast %cst_68 : f32 to vector<1x128xf32>
    %162 = arith.mulf %161, %155 : vector<1x128xf32>
    %163 = arith.addf %139, %162 : vector<1x128xf32>
    %cst_69 = arith.constant 0.000000e+00 : f32
    %cst_70 = arith.constant 5.000000e+00 : f32
    %164 = vector.broadcast %cst_69 : f32 to vector<1x128xf32>
    %165 = arith.maximumf %164, %163 : vector<1x128xf32>
    %166 = vector.broadcast %cst_70 : f32 to vector<1x128xf32>
    %167 = arith.minimumf %166, %165 : vector<1x128xf32>
    %cst_71 = arith.constant 0.000000e+00 : f32
    %168 = vector.broadcast %cst_71 : f32 to vector<1x128xf32>
    %169 = arith.cmpf ogt, %160, %168 : vector<1x128xf32>
    %170 = arith.select %169, %139, %167 : vector<1x128xi1>, vector<1x128xf32>
    %c5_i32 = arith.constant 5 : i32
    %171 = vector.broadcast %170 : vector<1x128xf32> to vector<32x128xf32>
    %172 = arith.mulf %171, %13 : vector<32x128xf32>
    %173 = arith.addf %12, %172 : vector<32x128xf32>
    %cst_72 = arith.constant 0.000000e+00 : f32
    %174 = vector.broadcast %cst_72 : f32 to vector<32x128xf32>
    %175 = arith.maximumf %173, %174 : vector<32x128xf32>
    %cst_73 = arith.constant dense<0.000000e+00> : vector<32x128xf32>
    %176 = tpu.matmul %5, %175, %cst_73 {dimension_numbers = #tpu.dot_dimension_numbers<[1], [0], [0], [1], [0, 0, 1, 1], [], []>} : vector<32x32xf32>, vector<32x128xf32>, vector<32x128xf32> -> vector<32x128xf32>
    %177 = vector.broadcast %7 : vector<32x1xf32> to vector<32x128xf32>
    %178 = arith.addf %176, %177 : vector<32x128xf32>
    %cst_74 = arith.constant 0.000000e+00 : f32
    %179 = vector.broadcast %cst_74 : f32 to vector<32x128xf32>
    %180 = arith.maximumf %178, %179 : vector<32x128xf32>
    %181 = vector.broadcast %8 : vector<32x1xf32> to vector<32x128xf32>
    %182 = arith.mulf %181, %180 : vector<32x128xf32>
    %cst_75 = arith.constant dense<0.000000e+00> : vector<128xf32>
    %183 = vector.multi_reduction <add>, %182, %cst_75 [0] : vector<32x128xf32> to vector<128xf32>
    %184 = vector.shape_cast %183 : vector<128xf32> to vector<1x128xf32>
    %185 = vector.broadcast %9 : vector<1x1xf32> to vector<1x128xf32>
    %186 = arith.addf %184, %185 : vector<1x128xf32>
    %187 = math.absf %186 : vector<1x128xf32>
    %cst_76 = arith.constant 3.000000e-04 : f32
    %188 = vector.broadcast %cst_76 : f32 to vector<1x128xf32>
    %189 = arith.cmpf olt, %187, %188 : vector<1x128xf32>
    %cst_77 = arith.constant 1.000000e+00 : f32
    %190 = vector.broadcast %cst_77 : f32 to vector<1x128xf32>
    %191 = arith.select %189, %190, %160 : vector<1x128xi1>, vector<1x128xf32>
    %cst_78 = arith.constant 8.000000e-01 : f32
    %192 = vector.broadcast %cst_78 : f32 to vector<1x128xf32>
    %193 = arith.mulf %192, %186 : vector<1x128xf32>
    %194 = arith.addf %170, %193 : vector<1x128xf32>
    %cst_79 = arith.constant 0.000000e+00 : f32
    %cst_80 = arith.constant 5.000000e+00 : f32
    %195 = vector.broadcast %cst_79 : f32 to vector<1x128xf32>
    %196 = arith.maximumf %195, %194 : vector<1x128xf32>
    %197 = vector.broadcast %cst_80 : f32 to vector<1x128xf32>
    %198 = arith.minimumf %197, %196 : vector<1x128xf32>
    %cst_81 = arith.constant 0.000000e+00 : f32
    %199 = vector.broadcast %cst_81 : f32 to vector<1x128xf32>
    %200 = arith.cmpf ogt, %191, %199 : vector<1x128xf32>
    %201 = arith.select %200, %170, %198 : vector<1x128xi1>, vector<1x128xf32>
    %c6_i32 = arith.constant 6 : i32
    %202 = vector.broadcast %201 : vector<1x128xf32> to vector<32x128xf32>
    %203 = arith.mulf %202, %13 : vector<32x128xf32>
    %204 = arith.addf %12, %203 : vector<32x128xf32>
    %cst_82 = arith.constant 0.000000e+00 : f32
    %205 = vector.broadcast %cst_82 : f32 to vector<32x128xf32>
    %206 = arith.maximumf %204, %205 : vector<32x128xf32>
    %cst_83 = arith.constant dense<0.000000e+00> : vector<32x128xf32>
    %207 = tpu.matmul %5, %206, %cst_83 {dimension_numbers = #tpu.dot_dimension_numbers<[1], [0], [0], [1], [0, 0, 1, 1], [], []>} : vector<32x32xf32>, vector<32x128xf32>, vector<32x128xf32> -> vector<32x128xf32>
    %208 = vector.broadcast %7 : vector<32x1xf32> to vector<32x128xf32>
    %209 = arith.addf %207, %208 : vector<32x128xf32>
    %cst_84 = arith.constant 0.000000e+00 : f32
    %210 = vector.broadcast %cst_84 : f32 to vector<32x128xf32>
    %211 = arith.maximumf %209, %210 : vector<32x128xf32>
    %212 = vector.broadcast %8 : vector<32x1xf32> to vector<32x128xf32>
    %213 = arith.mulf %212, %211 : vector<32x128xf32>
    %cst_85 = arith.constant dense<0.000000e+00> : vector<128xf32>
    %214 = vector.multi_reduction <add>, %213, %cst_85 [0] : vector<32x128xf32> to vector<128xf32>
    %215 = vector.shape_cast %214 : vector<128xf32> to vector<1x128xf32>
    %216 = vector.broadcast %9 : vector<1x1xf32> to vector<1x128xf32>
    %217 = arith.addf %215, %216 : vector<1x128xf32>
    %218 = math.absf %217 : vector<1x128xf32>
    %cst_86 = arith.constant 3.000000e-04 : f32
    %219 = vector.broadcast %cst_86 : f32 to vector<1x128xf32>
    %220 = arith.cmpf olt, %218, %219 : vector<1x128xf32>
    %cst_87 = arith.constant 1.000000e+00 : f32
    %221 = vector.broadcast %cst_87 : f32 to vector<1x128xf32>
    %222 = arith.select %220, %221, %191 : vector<1x128xi1>, vector<1x128xf32>
    %cst_88 = arith.constant 8.000000e-01 : f32
    %223 = vector.broadcast %cst_88 : f32 to vector<1x128xf32>
    %224 = arith.mulf %223, %217 : vector<1x128xf32>
    %225 = arith.addf %201, %224 : vector<1x128xf32>
    %cst_89 = arith.constant 0.000000e+00 : f32
    %cst_90 = arith.constant 5.000000e+00 : f32
    %226 = vector.broadcast %cst_89 : f32 to vector<1x128xf32>
    %227 = arith.maximumf %226, %225 : vector<1x128xf32>
    %228 = vector.broadcast %cst_90 : f32 to vector<1x128xf32>
    %229 = arith.minimumf %228, %227 : vector<1x128xf32>
    %cst_91 = arith.constant 0.000000e+00 : f32
    %230 = vector.broadcast %cst_91 : f32 to vector<1x128xf32>
    %231 = arith.cmpf ogt, %222, %230 : vector<1x128xf32>
    %232 = arith.select %231, %201, %229 : vector<1x128xi1>, vector<1x128xf32>
    %c7_i32 = arith.constant 7 : i32
    %233 = vector.broadcast %232 : vector<1x128xf32> to vector<32x128xf32>
    %234 = arith.mulf %233, %13 : vector<32x128xf32>
    %235 = arith.addf %12, %234 : vector<32x128xf32>
    %cst_92 = arith.constant 0.000000e+00 : f32
    %236 = vector.broadcast %cst_92 : f32 to vector<32x128xf32>
    %237 = arith.maximumf %235, %236 : vector<32x128xf32>
    %cst_93 = arith.constant dense<0.000000e+00> : vector<32x128xf32>
    %238 = tpu.matmul %5, %237, %cst_93 {dimension_numbers = #tpu.dot_dimension_numbers<[1], [0], [0], [1], [0, 0, 1, 1], [], []>} : vector<32x32xf32>, vector<32x128xf32>, vector<32x128xf32> -> vector<32x128xf32>
    %239 = vector.broadcast %7 : vector<32x1xf32> to vector<32x128xf32>
    %240 = arith.addf %238, %239 : vector<32x128xf32>
    %cst_94 = arith.constant 0.000000e+00 : f32
    %241 = vector.broadcast %cst_94 : f32 to vector<32x128xf32>
    %242 = arith.maximumf %240, %241 : vector<32x128xf32>
    %243 = vector.broadcast %8 : vector<32x1xf32> to vector<32x128xf32>
    %244 = arith.mulf %243, %242 : vector<32x128xf32>
    %cst_95 = arith.constant dense<0.000000e+00> : vector<128xf32>
    %245 = vector.multi_reduction <add>, %244, %cst_95 [0] : vector<32x128xf32> to vector<128xf32>
    %246 = vector.shape_cast %245 : vector<128xf32> to vector<1x128xf32>
    %247 = vector.broadcast %9 : vector<1x1xf32> to vector<1x128xf32>
    %248 = arith.addf %246, %247 : vector<1x128xf32>
    %249 = math.absf %248 : vector<1x128xf32>
    %cst_96 = arith.constant 3.000000e-04 : f32
    %250 = vector.broadcast %cst_96 : f32 to vector<1x128xf32>
    %251 = arith.cmpf olt, %249, %250 : vector<1x128xf32>
    %cst_97 = arith.constant 1.000000e+00 : f32
    %252 = vector.broadcast %cst_97 : f32 to vector<1x128xf32>
    %253 = arith.select %251, %252, %222 : vector<1x128xi1>, vector<1x128xf32>
    %cst_98 = arith.constant 8.000000e-01 : f32
    %254 = vector.broadcast %cst_98 : f32 to vector<1x128xf32>
    %255 = arith.mulf %254, %248 : vector<1x128xf32>
    %256 = arith.addf %232, %255 : vector<1x128xf32>
    %cst_99 = arith.constant 0.000000e+00 : f32
    %cst_100 = arith.constant 5.000000e+00 : f32
    %257 = vector.broadcast %cst_99 : f32 to vector<1x128xf32>
    %258 = arith.maximumf %257, %256 : vector<1x128xf32>
    %259 = vector.broadcast %cst_100 : f32 to vector<1x128xf32>
    %260 = arith.minimumf %259, %258 : vector<1x128xf32>
    %cst_101 = arith.constant 0.000000e+00 : f32
    %261 = vector.broadcast %cst_101 : f32 to vector<1x128xf32>
    %262 = arith.cmpf ogt, %253, %261 : vector<1x128xf32>
    %263 = arith.select %262, %232, %260 : vector<1x128xi1>, vector<1x128xf32>
    %c8_i32 = arith.constant 8 : i32
    %264 = vector.broadcast %263 : vector<1x128xf32> to vector<32x128xf32>
    %265 = arith.mulf %264, %13 : vector<32x128xf32>
    %266 = arith.addf %12, %265 : vector<32x128xf32>
    %cst_102 = arith.constant 0.000000e+00 : f32
    %267 = vector.broadcast %cst_102 : f32 to vector<32x128xf32>
    %268 = arith.maximumf %266, %267 : vector<32x128xf32>
    %cst_103 = arith.constant dense<0.000000e+00> : vector<32x128xf32>
    %269 = tpu.matmul %5, %268, %cst_103 {dimension_numbers = #tpu.dot_dimension_numbers<[1], [0], [0], [1], [0, 0, 1, 1], [], []>} : vector<32x32xf32>, vector<32x128xf32>, vector<32x128xf32> -> vector<32x128xf32>
    %270 = vector.broadcast %7 : vector<32x1xf32> to vector<32x128xf32>
    %271 = arith.addf %269, %270 : vector<32x128xf32>
    %cst_104 = arith.constant 0.000000e+00 : f32
    %272 = vector.broadcast %cst_104 : f32 to vector<32x128xf32>
    %273 = arith.maximumf %271, %272 : vector<32x128xf32>
    %274 = vector.broadcast %8 : vector<32x1xf32> to vector<32x128xf32>
    %275 = arith.mulf %274, %273 : vector<32x128xf32>
    %cst_105 = arith.constant dense<0.000000e+00> : vector<128xf32>
    %276 = vector.multi_reduction <add>, %275, %cst_105 [0] : vector<32x128xf32> to vector<128xf32>
    %277 = vector.shape_cast %276 : vector<128xf32> to vector<1x128xf32>
    %278 = vector.broadcast %9 : vector<1x1xf32> to vector<1x128xf32>
    %279 = arith.addf %277, %278 : vector<1x128xf32>
    %280 = math.absf %279 : vector<1x128xf32>
    %cst_106 = arith.constant 3.000000e-04 : f32
    %281 = vector.broadcast %cst_106 : f32 to vector<1x128xf32>
    %282 = arith.cmpf olt, %280, %281 : vector<1x128xf32>
    %cst_107 = arith.constant 1.000000e+00 : f32
    %283 = vector.broadcast %cst_107 : f32 to vector<1x128xf32>
    %284 = arith.select %282, %283, %253 : vector<1x128xi1>, vector<1x128xf32>
    %cst_108 = arith.constant 8.000000e-01 : f32
    %285 = vector.broadcast %cst_108 : f32 to vector<1x128xf32>
    %286 = arith.mulf %285, %279 : vector<1x128xf32>
    %287 = arith.addf %263, %286 : vector<1x128xf32>
    %cst_109 = arith.constant 0.000000e+00 : f32
    %cst_110 = arith.constant 5.000000e+00 : f32
    %288 = vector.broadcast %cst_109 : f32 to vector<1x128xf32>
    %289 = arith.maximumf %288, %287 : vector<1x128xf32>
    %290 = vector.broadcast %cst_110 : f32 to vector<1x128xf32>
    %291 = arith.minimumf %290, %289 : vector<1x128xf32>
    %cst_111 = arith.constant 0.000000e+00 : f32
    %292 = vector.broadcast %cst_111 : f32 to vector<1x128xf32>
    %293 = arith.cmpf ogt, %284, %292 : vector<1x128xf32>
    %294 = arith.select %293, %263, %291 : vector<1x128xi1>, vector<1x128xf32>
    %c9_i32 = arith.constant 9 : i32
    %295 = vector.broadcast %294 : vector<1x128xf32> to vector<32x128xf32>
    %296 = arith.mulf %295, %13 : vector<32x128xf32>
    %297 = arith.addf %12, %296 : vector<32x128xf32>
    %cst_112 = arith.constant 0.000000e+00 : f32
    %298 = vector.broadcast %cst_112 : f32 to vector<32x128xf32>
    %299 = arith.maximumf %297, %298 : vector<32x128xf32>
    %cst_113 = arith.constant dense<0.000000e+00> : vector<32x128xf32>
    %300 = tpu.matmul %5, %299, %cst_113 {dimension_numbers = #tpu.dot_dimension_numbers<[1], [0], [0], [1], [0, 0, 1, 1], [], []>} : vector<32x32xf32>, vector<32x128xf32>, vector<32x128xf32> -> vector<32x128xf32>
    %301 = vector.broadcast %7 : vector<32x1xf32> to vector<32x128xf32>
    %302 = arith.addf %300, %301 : vector<32x128xf32>
    %cst_114 = arith.constant 0.000000e+00 : f32
    %303 = vector.broadcast %cst_114 : f32 to vector<32x128xf32>
    %304 = arith.maximumf %302, %303 : vector<32x128xf32>
    %305 = vector.broadcast %8 : vector<32x1xf32> to vector<32x128xf32>
    %306 = arith.mulf %305, %304 : vector<32x128xf32>
    %cst_115 = arith.constant dense<0.000000e+00> : vector<128xf32>
    %307 = vector.multi_reduction <add>, %306, %cst_115 [0] : vector<32x128xf32> to vector<128xf32>
    %308 = vector.shape_cast %307 : vector<128xf32> to vector<1x128xf32>
    %309 = vector.broadcast %9 : vector<1x1xf32> to vector<1x128xf32>
    %310 = arith.addf %308, %309 : vector<1x128xf32>
    %311 = math.absf %310 : vector<1x128xf32>
    %cst_116 = arith.constant 3.000000e-04 : f32
    %312 = vector.broadcast %cst_116 : f32 to vector<1x128xf32>
    %313 = arith.cmpf olt, %311, %312 : vector<1x128xf32>
    %cst_117 = arith.constant 1.000000e+00 : f32
    %314 = vector.broadcast %cst_117 : f32 to vector<1x128xf32>
    %315 = arith.select %313, %314, %284 : vector<1x128xi1>, vector<1x128xf32>
    %cst_118 = arith.constant 8.000000e-01 : f32
    %316 = vector.broadcast %cst_118 : f32 to vector<1x128xf32>
    %317 = arith.mulf %316, %310 : vector<1x128xf32>
    %318 = arith.addf %294, %317 : vector<1x128xf32>
    %cst_119 = arith.constant 0.000000e+00 : f32
    %cst_120 = arith.constant 5.000000e+00 : f32
    %319 = vector.broadcast %cst_119 : f32 to vector<1x128xf32>
    %320 = arith.maximumf %319, %318 : vector<1x128xf32>
    %321 = vector.broadcast %cst_120 : f32 to vector<1x128xf32>
    %322 = arith.minimumf %321, %320 : vector<1x128xf32>
    %cst_121 = arith.constant 0.000000e+00 : f32
    %323 = vector.broadcast %cst_121 : f32 to vector<1x128xf32>
    %324 = arith.cmpf ogt, %315, %323 : vector<1x128xf32>
    %325 = arith.select %324, %294, %322 : vector<1x128xi1>, vector<1x128xf32>
    %c10_i32 = arith.constant 10 : i32
    %326 = vector.broadcast %325 : vector<1x128xf32> to vector<32x128xf32>
    %327 = arith.mulf %326, %13 : vector<32x128xf32>
    %328 = arith.addf %12, %327 : vector<32x128xf32>
    %cst_122 = arith.constant 0.000000e+00 : f32
    %329 = vector.broadcast %cst_122 : f32 to vector<32x128xf32>
    %330 = arith.maximumf %328, %329 : vector<32x128xf32>
    %cst_123 = arith.constant dense<0.000000e+00> : vector<32x128xf32>
    %331 = tpu.matmul %5, %330, %cst_123 {dimension_numbers = #tpu.dot_dimension_numbers<[1], [0], [0], [1], [0, 0, 1, 1], [], []>} : vector<32x32xf32>, vector<32x128xf32>, vector<32x128xf32> -> vector<32x128xf32>
    %332 = vector.broadcast %7 : vector<32x1xf32> to vector<32x128xf32>
    %333 = arith.addf %331, %332 : vector<32x128xf32>
    %cst_124 = arith.constant 0.000000e+00 : f32
    %334 = vector.broadcast %cst_124 : f32 to vector<32x128xf32>
    %335 = arith.maximumf %333, %334 : vector<32x128xf32>
    %336 = vector.broadcast %8 : vector<32x1xf32> to vector<32x128xf32>
    %337 = arith.mulf %336, %335 : vector<32x128xf32>
    %cst_125 = arith.constant dense<0.000000e+00> : vector<128xf32>
    %338 = vector.multi_reduction <add>, %337, %cst_125 [0] : vector<32x128xf32> to vector<128xf32>
    %339 = vector.shape_cast %338 : vector<128xf32> to vector<1x128xf32>
    %340 = vector.broadcast %9 : vector<1x1xf32> to vector<1x128xf32>
    %341 = arith.addf %339, %340 : vector<1x128xf32>
    %342 = math.absf %341 : vector<1x128xf32>
    %cst_126 = arith.constant 3.000000e-04 : f32
    %343 = vector.broadcast %cst_126 : f32 to vector<1x128xf32>
    %344 = arith.cmpf olt, %342, %343 : vector<1x128xf32>
    %cst_127 = arith.constant 1.000000e+00 : f32
    %345 = vector.broadcast %cst_127 : f32 to vector<1x128xf32>
    %346 = arith.select %344, %345, %315 : vector<1x128xi1>, vector<1x128xf32>
    %cst_128 = arith.constant 8.000000e-01 : f32
    %347 = vector.broadcast %cst_128 : f32 to vector<1x128xf32>
    %348 = arith.mulf %347, %341 : vector<1x128xf32>
    %349 = arith.addf %325, %348 : vector<1x128xf32>
    %cst_129 = arith.constant 0.000000e+00 : f32
    %cst_130 = arith.constant 5.000000e+00 : f32
    %350 = vector.broadcast %cst_129 : f32 to vector<1x128xf32>
    %351 = arith.maximumf %350, %349 : vector<1x128xf32>
    %352 = vector.broadcast %cst_130 : f32 to vector<1x128xf32>
    %353 = arith.minimumf %352, %351 : vector<1x128xf32>
    %cst_131 = arith.constant 0.000000e+00 : f32
    %354 = vector.broadcast %cst_131 : f32 to vector<1x128xf32>
    %355 = arith.cmpf ogt, %346, %354 : vector<1x128xf32>
    %356 = arith.select %355, %325, %353 : vector<1x128xi1>, vector<1x128xf32>
    %c11_i32 = arith.constant 11 : i32
    %357 = vector.broadcast %356 : vector<1x128xf32> to vector<32x128xf32>
    %358 = arith.mulf %357, %13 : vector<32x128xf32>
    %359 = arith.addf %12, %358 : vector<32x128xf32>
    %cst_132 = arith.constant 0.000000e+00 : f32
    %360 = vector.broadcast %cst_132 : f32 to vector<32x128xf32>
    %361 = arith.maximumf %359, %360 : vector<32x128xf32>
    %cst_133 = arith.constant dense<0.000000e+00> : vector<32x128xf32>
    %362 = tpu.matmul %5, %361, %cst_133 {dimension_numbers = #tpu.dot_dimension_numbers<[1], [0], [0], [1], [0, 0, 1, 1], [], []>} : vector<32x32xf32>, vector<32x128xf32>, vector<32x128xf32> -> vector<32x128xf32>
    %363 = vector.broadcast %7 : vector<32x1xf32> to vector<32x128xf32>
    %364 = arith.addf %362, %363 : vector<32x128xf32>
    %cst_134 = arith.constant 0.000000e+00 : f32
    %365 = vector.broadcast %cst_134 : f32 to vector<32x128xf32>
    %366 = arith.maximumf %364, %365 : vector<32x128xf32>
    %367 = vector.broadcast %8 : vector<32x1xf32> to vector<32x128xf32>
    %368 = arith.mulf %367, %366 : vector<32x128xf32>
    %cst_135 = arith.constant dense<0.000000e+00> : vector<128xf32>
    %369 = vector.multi_reduction <add>, %368, %cst_135 [0] : vector<32x128xf32> to vector<128xf32>
    %370 = vector.shape_cast %369 : vector<128xf32> to vector<1x128xf32>
    %371 = vector.broadcast %9 : vector<1x1xf32> to vector<1x128xf32>
    %372 = arith.addf %370, %371 : vector<1x128xf32>
    %373 = math.absf %372 : vector<1x128xf32>
    %cst_136 = arith.constant 3.000000e-04 : f32
    %374 = vector.broadcast %cst_136 : f32 to vector<1x128xf32>
    %375 = arith.cmpf olt, %373, %374 : vector<1x128xf32>
    %cst_137 = arith.constant 1.000000e+00 : f32
    %376 = vector.broadcast %cst_137 : f32 to vector<1x128xf32>
    %377 = arith.select %375, %376, %346 : vector<1x128xi1>, vector<1x128xf32>
    %cst_138 = arith.constant 8.000000e-01 : f32
    %378 = vector.broadcast %cst_138 : f32 to vector<1x128xf32>
    %379 = arith.mulf %378, %372 : vector<1x128xf32>
    %380 = arith.addf %356, %379 : vector<1x128xf32>
    %cst_139 = arith.constant 0.000000e+00 : f32
    %cst_140 = arith.constant 5.000000e+00 : f32
    %381 = vector.broadcast %cst_139 : f32 to vector<1x128xf32>
    %382 = arith.maximumf %381, %380 : vector<1x128xf32>
    %383 = vector.broadcast %cst_140 : f32 to vector<1x128xf32>
    %384 = arith.minimumf %383, %382 : vector<1x128xf32>
    %cst_141 = arith.constant 0.000000e+00 : f32
    %385 = vector.broadcast %cst_141 : f32 to vector<1x128xf32>
    %386 = arith.cmpf ogt, %377, %385 : vector<1x128xf32>
    %387 = arith.select %386, %356, %384 : vector<1x128xi1>, vector<1x128xf32>
    %c12_i32 = arith.constant 12 : i32
    %388 = vector.broadcast %387 : vector<1x128xf32> to vector<32x128xf32>
    %389 = arith.mulf %388, %13 : vector<32x128xf32>
    %390 = arith.addf %12, %389 : vector<32x128xf32>
    %cst_142 = arith.constant 0.000000e+00 : f32
    %391 = vector.broadcast %cst_142 : f32 to vector<32x128xf32>
    %392 = arith.maximumf %390, %391 : vector<32x128xf32>
    %cst_143 = arith.constant dense<0.000000e+00> : vector<32x128xf32>
    %393 = tpu.matmul %5, %392, %cst_143 {dimension_numbers = #tpu.dot_dimension_numbers<[1], [0], [0], [1], [0, 0, 1, 1], [], []>} : vector<32x32xf32>, vector<32x128xf32>, vector<32x128xf32> -> vector<32x128xf32>
    %394 = vector.broadcast %7 : vector<32x1xf32> to vector<32x128xf32>
    %395 = arith.addf %393, %394 : vector<32x128xf32>
    %cst_144 = arith.constant 0.000000e+00 : f32
    %396 = vector.broadcast %cst_144 : f32 to vector<32x128xf32>
    %397 = arith.maximumf %395, %396 : vector<32x128xf32>
    %398 = vector.broadcast %8 : vector<32x1xf32> to vector<32x128xf32>
    %399 = arith.mulf %398, %397 : vector<32x128xf32>
    %cst_145 = arith.constant dense<0.000000e+00> : vector<128xf32>
    %400 = vector.multi_reduction <add>, %399, %cst_145 [0] : vector<32x128xf32> to vector<128xf32>
    %401 = vector.shape_cast %400 : vector<128xf32> to vector<1x128xf32>
    %402 = vector.broadcast %9 : vector<1x1xf32> to vector<1x128xf32>
    %403 = arith.addf %401, %402 : vector<1x128xf32>
    %404 = math.absf %403 : vector<1x128xf32>
    %cst_146 = arith.constant 3.000000e-04 : f32
    %405 = vector.broadcast %cst_146 : f32 to vector<1x128xf32>
    %406 = arith.cmpf olt, %404, %405 : vector<1x128xf32>
    %cst_147 = arith.constant 1.000000e+00 : f32
    %407 = vector.broadcast %cst_147 : f32 to vector<1x128xf32>
    %408 = arith.select %406, %407, %377 : vector<1x128xi1>, vector<1x128xf32>
    %cst_148 = arith.constant 8.000000e-01 : f32
    %409 = vector.broadcast %cst_148 : f32 to vector<1x128xf32>
    %410 = arith.mulf %409, %403 : vector<1x128xf32>
    %411 = arith.addf %387, %410 : vector<1x128xf32>
    %cst_149 = arith.constant 0.000000e+00 : f32
    %cst_150 = arith.constant 5.000000e+00 : f32
    %412 = vector.broadcast %cst_149 : f32 to vector<1x128xf32>
    %413 = arith.maximumf %412, %411 : vector<1x128xf32>
    %414 = vector.broadcast %cst_150 : f32 to vector<1x128xf32>
    %415 = arith.minimumf %414, %413 : vector<1x128xf32>
    %cst_151 = arith.constant 0.000000e+00 : f32
    %416 = vector.broadcast %cst_151 : f32 to vector<1x128xf32>
    %417 = arith.cmpf ogt, %408, %416 : vector<1x128xf32>
    %418 = arith.select %417, %387, %415 : vector<1x128xi1>, vector<1x128xf32>
    %c13_i32 = arith.constant 13 : i32
    %419 = vector.broadcast %418 : vector<1x128xf32> to vector<32x128xf32>
    %420 = arith.mulf %419, %13 : vector<32x128xf32>
    %421 = arith.addf %12, %420 : vector<32x128xf32>
    %cst_152 = arith.constant 0.000000e+00 : f32
    %422 = vector.broadcast %cst_152 : f32 to vector<32x128xf32>
    %423 = arith.maximumf %421, %422 : vector<32x128xf32>
    %cst_153 = arith.constant dense<0.000000e+00> : vector<32x128xf32>
    %424 = tpu.matmul %5, %423, %cst_153 {dimension_numbers = #tpu.dot_dimension_numbers<[1], [0], [0], [1], [0, 0, 1, 1], [], []>} : vector<32x32xf32>, vector<32x128xf32>, vector<32x128xf32> -> vector<32x128xf32>
    %425 = vector.broadcast %7 : vector<32x1xf32> to vector<32x128xf32>
    %426 = arith.addf %424, %425 : vector<32x128xf32>
    %cst_154 = arith.constant 0.000000e+00 : f32
    %427 = vector.broadcast %cst_154 : f32 to vector<32x128xf32>
    %428 = arith.maximumf %426, %427 : vector<32x128xf32>
    %429 = vector.broadcast %8 : vector<32x1xf32> to vector<32x128xf32>
    %430 = arith.mulf %429, %428 : vector<32x128xf32>
    %cst_155 = arith.constant dense<0.000000e+00> : vector<128xf32>
    %431 = vector.multi_reduction <add>, %430, %cst_155 [0] : vector<32x128xf32> to vector<128xf32>
    %432 = vector.shape_cast %431 : vector<128xf32> to vector<1x128xf32>
    %433 = vector.broadcast %9 : vector<1x1xf32> to vector<1x128xf32>
    %434 = arith.addf %432, %433 : vector<1x128xf32>
    %435 = math.absf %434 : vector<1x128xf32>
    %cst_156 = arith.constant 3.000000e-04 : f32
    %436 = vector.broadcast %cst_156 : f32 to vector<1x128xf32>
    %437 = arith.cmpf olt, %435, %436 : vector<1x128xf32>
    %cst_157 = arith.constant 1.000000e+00 : f32
    %438 = vector.broadcast %cst_157 : f32 to vector<1x128xf32>
    %439 = arith.select %437, %438, %408 : vector<1x128xi1>, vector<1x128xf32>
    %cst_158 = arith.constant 8.000000e-01 : f32
    %440 = vector.broadcast %cst_158 : f32 to vector<1x128xf32>
    %441 = arith.mulf %440, %434 : vector<1x128xf32>
    %442 = arith.addf %418, %441 : vector<1x128xf32>
    %cst_159 = arith.constant 0.000000e+00 : f32
    %cst_160 = arith.constant 5.000000e+00 : f32
    %443 = vector.broadcast %cst_159 : f32 to vector<1x128xf32>
    %444 = arith.maximumf %443, %442 : vector<1x128xf32>
    %445 = vector.broadcast %cst_160 : f32 to vector<1x128xf32>
    %446 = arith.minimumf %445, %444 : vector<1x128xf32>
    %cst_161 = arith.constant 0.000000e+00 : f32
    %447 = vector.broadcast %cst_161 : f32 to vector<1x128xf32>
    %448 = arith.cmpf ogt, %439, %447 : vector<1x128xf32>
    %449 = arith.select %448, %418, %446 : vector<1x128xi1>, vector<1x128xf32>
    %c14_i32 = arith.constant 14 : i32
    %450 = vector.broadcast %449 : vector<1x128xf32> to vector<32x128xf32>
    %451 = arith.mulf %450, %13 : vector<32x128xf32>
    %452 = arith.addf %12, %451 : vector<32x128xf32>
    %cst_162 = arith.constant 0.000000e+00 : f32
    %453 = vector.broadcast %cst_162 : f32 to vector<32x128xf32>
    %454 = arith.maximumf %452, %453 : vector<32x128xf32>
    %cst_163 = arith.constant dense<0.000000e+00> : vector<32x128xf32>
    %455 = tpu.matmul %5, %454, %cst_163 {dimension_numbers = #tpu.dot_dimension_numbers<[1], [0], [0], [1], [0, 0, 1, 1], [], []>} : vector<32x32xf32>, vector<32x128xf32>, vector<32x128xf32> -> vector<32x128xf32>
    %456 = vector.broadcast %7 : vector<32x1xf32> to vector<32x128xf32>
    %457 = arith.addf %455, %456 : vector<32x128xf32>
    %cst_164 = arith.constant 0.000000e+00 : f32
    %458 = vector.broadcast %cst_164 : f32 to vector<32x128xf32>
    %459 = arith.maximumf %457, %458 : vector<32x128xf32>
    %460 = vector.broadcast %8 : vector<32x1xf32> to vector<32x128xf32>
    %461 = arith.mulf %460, %459 : vector<32x128xf32>
    %cst_165 = arith.constant dense<0.000000e+00> : vector<128xf32>
    %462 = vector.multi_reduction <add>, %461, %cst_165 [0] : vector<32x128xf32> to vector<128xf32>
    %463 = vector.shape_cast %462 : vector<128xf32> to vector<1x128xf32>
    %464 = vector.broadcast %9 : vector<1x1xf32> to vector<1x128xf32>
    %465 = arith.addf %463, %464 : vector<1x128xf32>
    %466 = math.absf %465 : vector<1x128xf32>
    %cst_166 = arith.constant 3.000000e-04 : f32
    %467 = vector.broadcast %cst_166 : f32 to vector<1x128xf32>
    %468 = arith.cmpf olt, %466, %467 : vector<1x128xf32>
    %cst_167 = arith.constant 1.000000e+00 : f32
    %469 = vector.broadcast %cst_167 : f32 to vector<1x128xf32>
    %470 = arith.select %468, %469, %439 : vector<1x128xi1>, vector<1x128xf32>
    %cst_168 = arith.constant 8.000000e-01 : f32
    %471 = vector.broadcast %cst_168 : f32 to vector<1x128xf32>
    %472 = arith.mulf %471, %465 : vector<1x128xf32>
    %473 = arith.addf %449, %472 : vector<1x128xf32>
    %cst_169 = arith.constant 0.000000e+00 : f32
    %cst_170 = arith.constant 5.000000e+00 : f32
    %474 = vector.broadcast %cst_169 : f32 to vector<1x128xf32>
    %475 = arith.maximumf %474, %473 : vector<1x128xf32>
    %476 = vector.broadcast %cst_170 : f32 to vector<1x128xf32>
    %477 = arith.minimumf %476, %475 : vector<1x128xf32>
    %cst_171 = arith.constant 0.000000e+00 : f32
    %478 = vector.broadcast %cst_171 : f32 to vector<1x128xf32>
    %479 = arith.cmpf ogt, %470, %478 : vector<1x128xf32>
    %480 = arith.select %479, %449, %477 : vector<1x128xi1>, vector<1x128xf32>
    %c15_i32 = arith.constant 15 : i32
    %481 = vector.broadcast %480 : vector<1x128xf32> to vector<32x128xf32>
    %482 = arith.mulf %481, %13 : vector<32x128xf32>
    %483 = arith.addf %12, %482 : vector<32x128xf32>
    %cst_172 = arith.constant 0.000000e+00 : f32
    %484 = vector.broadcast %cst_172 : f32 to vector<32x128xf32>
    %485 = arith.maximumf %483, %484 : vector<32x128xf32>
    %cst_173 = arith.constant dense<0.000000e+00> : vector<32x128xf32>
    %486 = tpu.matmul %5, %485, %cst_173 {dimension_numbers = #tpu.dot_dimension_numbers<[1], [0], [0], [1], [0, 0, 1, 1], [], []>} : vector<32x32xf32>, vector<32x128xf32>, vector<32x128xf32> -> vector<32x128xf32>
    %487 = vector.broadcast %7 : vector<32x1xf32> to vector<32x128xf32>
    %488 = arith.addf %486, %487 : vector<32x128xf32>
    %cst_174 = arith.constant 0.000000e+00 : f32
    %489 = vector.broadcast %cst_174 : f32 to vector<32x128xf32>
    %490 = arith.maximumf %488, %489 : vector<32x128xf32>
    %491 = vector.broadcast %8 : vector<32x1xf32> to vector<32x128xf32>
    %492 = arith.mulf %491, %490 : vector<32x128xf32>
    %cst_175 = arith.constant dense<0.000000e+00> : vector<128xf32>
    %493 = vector.multi_reduction <add>, %492, %cst_175 [0] : vector<32x128xf32> to vector<128xf32>
    %494 = vector.shape_cast %493 : vector<128xf32> to vector<1x128xf32>
    %495 = vector.broadcast %9 : vector<1x1xf32> to vector<1x128xf32>
    %496 = arith.addf %494, %495 : vector<1x128xf32>
    %497 = math.absf %496 : vector<1x128xf32>
    %cst_176 = arith.constant 3.000000e-04 : f32
    %498 = vector.broadcast %cst_176 : f32 to vector<1x128xf32>
    %499 = arith.cmpf olt, %497, %498 : vector<1x128xf32>
    %cst_177 = arith.constant 1.000000e+00 : f32
    %500 = vector.broadcast %cst_177 : f32 to vector<1x128xf32>
    %501 = arith.select %499, %500, %470 : vector<1x128xi1>, vector<1x128xf32>
    %cst_178 = arith.constant 8.000000e-01 : f32
    %502 = vector.broadcast %cst_178 : f32 to vector<1x128xf32>
    %503 = arith.mulf %502, %496 : vector<1x128xf32>
    %504 = arith.addf %480, %503 : vector<1x128xf32>
    %cst_179 = arith.constant 0.000000e+00 : f32
    %cst_180 = arith.constant 5.000000e+00 : f32
    %505 = vector.broadcast %cst_179 : f32 to vector<1x128xf32>
    %506 = arith.maximumf %505, %504 : vector<1x128xf32>
    %507 = vector.broadcast %cst_180 : f32 to vector<1x128xf32>
    %508 = arith.minimumf %507, %506 : vector<1x128xf32>
    %cst_181 = arith.constant 0.000000e+00 : f32
    %509 = vector.broadcast %cst_181 : f32 to vector<1x128xf32>
    %510 = arith.cmpf ogt, %501, %509 : vector<1x128xf32>
    %511 = arith.select %510, %480, %508 : vector<1x128xi1>, vector<1x128xf32>
    %512 = vector.broadcast %511 : vector<1x128xf32> to vector<3x128xf32>
    %513 = arith.mulf %512, %1 : vector<3x128xf32>
    %514 = arith.addf %0, %513 : vector<3x128xf32>
    %515 = vector.broadcast %511 : vector<1x128xf32> to vector<32x128xf32>
    %516 = arith.mulf %515, %13 : vector<32x128xf32>
    %517 = arith.addf %12, %516 : vector<32x128xf32>
    %cst_182 = arith.constant 0.000000e+00 : f32
    %518 = vector.broadcast %cst_182 : f32 to vector<32x128xf32>
    %519 = arith.maximumf %517, %518 : vector<32x128xf32>
    %cst_183 = arith.constant dense<0.000000e+00> : vector<32x128xf32>
    %520 = tpu.matmul %5, %519, %cst_183 {dimension_numbers = #tpu.dot_dimension_numbers<[1], [0], [0], [1], [0, 0, 1, 1], [], []>} : vector<32x32xf32>, vector<32x128xf32>, vector<32x128xf32> -> vector<32x128xf32>
    %521 = vector.broadcast %7 : vector<32x1xf32> to vector<32x128xf32>
    %522 = arith.addf %520, %521 : vector<32x128xf32>
    %cst_184 = arith.constant 0.000000e+00 : f32
    %523 = vector.broadcast %cst_184 : f32 to vector<32x128xf32>
    %524 = arith.cmpf ogt, %517, %523 : vector<32x128xf32>
    %cst_185 = arith.constant 0.000000e+00 : f32
    %525 = vector.broadcast %cst_185 : f32 to vector<32x128xf32>
    %526 = arith.cmpf ogt, %522, %525 : vector<32x128xf32>
    %cst_186 = arith.constant 0.000000e+00 : f32
    %527 = vector.shape_cast %8 : vector<32x1xf32> to vector<32x1xf32>
    %528 = vector.broadcast %527 : vector<32x1xf32> to vector<32x128xf32>
    %529 = vector.broadcast %cst_186 : f32 to vector<32x128xf32>
    %530 = arith.select %526, %528, %529 : vector<32x128xi1>, vector<32x128xf32>
    %cst_187 = arith.constant dense<0.000000e+00> : vector<32x128xf32>
    %531 = tpu.matmul %6, %530, %cst_187 {dimension_numbers = #tpu.dot_dimension_numbers<[1], [0], [0], [1], [0, 0, 1, 1], [], []>} : vector<32x32xf32>, vector<32x128xf32>, vector<32x128xf32> -> vector<32x128xf32>
    %cst_188 = arith.constant 0.000000e+00 : f32
    %532 = vector.broadcast %cst_188 : f32 to vector<32x128xf32>
    %533 = arith.select %524, %531, %532 : vector<32x128xi1>, vector<32x128xf32>
    %cst_189 = arith.constant dense<0.000000e+00> : vector<3x128xf32>
    %534 = tpu.matmul %3, %533, %cst_189 {dimension_numbers = #tpu.dot_dimension_numbers<[1], [0], [0], [1], [0, 0, 1, 1], [], []>} : vector<3x32xf32>, vector<32x128xf32>, vector<3x128xf32> -> vector<3x128xf32>
    %535 = arith.mulf %534, %534 : vector<3x128xf32>
    %cst_190 = arith.constant dense<0.000000e+00> : vector<128xf32>
    %536 = vector.multi_reduction <add>, %535, %cst_190 [0] : vector<3x128xf32> to vector<128xf32>
    %537 = vector.shape_cast %536 : vector<128xf32> to vector<1x128xf32>
    %cst_191 = arith.constant 9.99999996E-13 : f32
    %538 = vector.broadcast %cst_191 : f32 to vector<1x128xf32>
    %539 = arith.addf %537, %538 : vector<1x128xf32>
    %540 = math.rsqrt %539 : vector<1x128xf32>
    %c0_192 = arith.constant 0 : index
    %c0_193 = arith.constant 0 : index
    %541 = vector.load %arg11[%c0_192, %c0_193] : memref<8x128xf32, #tpu.memory_space<vmem>>, vector<3x128xf32>
    tpu.vector_store %arg11[%c0_192, %c0_193], %514 {strides = array<i32>} : memref<8x128xf32, #tpu.memory_space<vmem>>, vector<3x128xf32>,
    %542 = vector.broadcast %540 : vector<1x128xf32> to vector<3x128xf32>
    %543 = arith.mulf %534, %542 : vector<3x128xf32>
    %c3 = arith.constant 3 : index
    %c0_194 = arith.constant 0 : index
    %544 = vector.load %arg11[%c3, %c0_194] : memref<8x128xf32, #tpu.memory_space<vmem>>, vector<3x128xf32>
    tpu.vector_store %arg11[%c3, %c0_194], %543 {strides = array<i32>} : memref<8x128xf32, #tpu.memory_space<vmem>>, vector<3x128xf32>,
    %c6 = arith.constant 6 : index
    %c0_195 = arith.constant 0 : index
    %545 = vector.load %arg11[%c6, %c0_195] : memref<8x128xf32, #tpu.memory_space<vmem>>, vector<1x128xf32>
    tpu.vector_store %arg11[%c6, %c0_195], %511 {strides = array<i32>} : memref<8x128xf32, #tpu.memory_space<vmem>>, vector<1x128xf32>,
    %c7 = arith.constant 7 : index
    %c0_196 = arith.constant 0 : index
    %546 = vector.load %arg11[%c7, %c0_196] : memref<8x128xf32, #tpu.memory_space<vmem>>, vector<1x128xf32>
    tpu.vector_store %arg11[%c7, %c0_196], %501 {strides = array<i32>} : memref<8x128xf32, #tpu.memory_space<vmem>>, vector<1x128xf32>,
    return
  }
  func.func @transform_0(%arg0: i32) -> (i32, i32) {
    %c0_i32 = arith.constant 0 : i32
    %c0_i32_0 = arith.constant 0 : i32
    return %c0_i32, %arg0 : i32, i32
  }
  func.func @transform_1(%arg0: i32) -> (i32, i32) {
    %c0_i32 = arith.constant 0 : i32
    %c0_i32_0 = arith.constant 0 : i32
    return %c0_i32, %arg0 : i32, i32
  }
  func.func @transform_2(%arg0: i32) -> (i32, i32) {
    %c0_i32 = arith.constant 0 : i32
    %c0_i32_0 = arith.constant 0 : i32
    %c0_i32_1 = arith.constant 0 : i32
    return %c0_i32, %c0_i32_0 : i32, i32
  }
  func.func @transform_3(%arg0: i32) -> (i32, i32) {
    %c0_i32 = arith.constant 0 : i32
    %c0_i32_0 = arith.constant 0 : i32
    %c0_i32_1 = arith.constant 0 : i32
    return %c0_i32, %c0_i32_0 : i32, i32
  }
  func.func @transform_4(%arg0: i32) -> (i32, i32) {
    %c0_i32 = arith.constant 0 : i32
    %c0_i32_0 = arith.constant 0 : i32
    %c0_i32_1 = arith.constant 0 : i32
    return %c0_i32, %c0_i32_0 : i32, i32
  }
  func.func @transform_5(%arg0: i32) -> (i32, i32) {
    %c0_i32 = arith.constant 0 : i32
    %c0_i32_0 = arith.constant 0 : i32
    %c0_i32_1 = arith.constant 0 : i32
    return %c0_i32, %c0_i32_0 : i32, i32
  }
  func.func @transform_6(%arg0: i32) -> (i32, i32) {
    %c0_i32 = arith.constant 0 : i32
    %c0_i32_0 = arith.constant 0 : i32
    %c0_i32_1 = arith.constant 0 : i32
    return %c0_i32, %c0_i32_0 : i32, i32
  }
  func.func @transform_7(%arg0: i32) -> (i32, i32) {
    %c0_i32 = arith.constant 0 : i32
    %c0_i32_0 = arith.constant 0 : i32
    %c0_i32_1 = arith.constant 0 : i32
    return %c0_i32, %c0_i32_0 : i32, i32
  }
  func.func @transform_8(%arg0: i32) -> (i32, i32) {
    %c0_i32 = arith.constant 0 : i32
    %c0_i32_0 = arith.constant 0 : i32
    %c0_i32_1 = arith.constant 0 : i32
    return %c0_i32, %c0_i32_0 : i32, i32
  }
  func.func @transform_9(%arg0: i32) -> (i32, i32) {
    %c0_i32 = arith.constant 0 : i32
    %c0_i32_0 = arith.constant 0 : i32
    %c0_i32_1 = arith.constant 0 : i32
    return %c0_i32, %c0_i32_0 : i32, i32
  }
  func.func @transform_10(%arg0: i32) -> (i32, i32) {
    %c0_i32 = arith.constant 0 : i32
    %c0_i32_0 = arith.constant 0 : i32
    return %c0_i32, %arg0 : i32, i32
  }
}

</mosaic_0001>

<llo_original>
// kernel: render_pallas.1
$region0: #{render_pallas.1}
  #allocation0 [shape = 'u32[]', space=smem, size = 0x4, offset = 0x4, fixed_abs, tag = 'smem constant byte address 0x4 - core index']
  #allocation1 [shape = 'u32[72,128]{1,0:T(1,128)}', space=vmem, size = 0x9000, scoped, tag = 'internal scratch']
  #allocation2 [shape = 'f32[1,1]{1,0:T(1,128)S(1)}', space=vmem, size = 0x200, scoped, tag = 'scoped memory for render_pallas.1']
  %s0 = inlined_call_operand.vmem [shape: f32[3,256], index: 0, kind: input, shape index: {}]
  %s1 = inlined_call_operand.vmem [shape: f32[3,256], index: 1, kind: input, shape index: {}]
  %s2 = inlined_call_operand.vmem [shape: f32[32,3], index: 2, kind: input, shape index: {}]
  %s3 = inlined_call_operand.vmem [shape: f32[3,32], index: 3, kind: input, shape index: {}]
  %s4 = inlined_call_operand.vmem [shape: f32[32,1], index: 4, kind: input, shape index: {}]
  %s5 = inlined_call_operand.vmem [shape: f32[32,32], index: 5, kind: input, shape index: {}]
  %s6 = inlined_call_operand.vmem [shape: f32[32,32], index: 6, kind: input, shape index: {}]
  %s7 = inlined_call_operand.vmem [shape: f32[32,1], index: 7, kind: input, shape index: {}]
  %s8 = inlined_call_operand.vmem [shape: f32[32,1], index: 8, kind: input, shape index: {}]
  %s9 = inlined_call_operand.<no memory space> [shape: f32[1,1], index: 9, kind: input, shape index: {}]
  %s10 = inlined_call_operand.hbm [shape: f32[8,256], index: 10, kind: output, shape index: {}]
  %s11 = sld [smem:[#allocation0]]
  $region73: #{render_pallas.1} parent=0
    _
  %s13 = ssub.s32 1, %s11
  %s14 = scalar_select 0, %s13, %s11
  %v15 = vstv %s9
  %16 = vst [vmem:[#allocation2] sm:$0x1] %v15
  $region1: #{render_pallas.1} parent=0
    #allocation3 [shape = 'u8[8192]{0}', space=vmem, size = 0x2000, scoped, tag = 'output window, operand 0']
    #allocation4 [shape = 's32[2]{0}', space=sflag, size = 0x8, scoped, tag = 'scoped memory for render_pallas.1']
    %17 = vsyncpa [#allocation4], 0
    %s18 = scalar_lea.sflag [#allocation4], 1
    %19 = vsyncpa %s18, 0
    loop: start=0, step=1, limit=4
    $region2: #{render_pallas.1} parent=1 // loop_pre_header
      _
    $region3: #{render_pallas.1} parent=1 // loop_header
      %s21 = sphi 0, %s25
      %p22 = scmp.ge.s32.totalorder %s21, 4
      %s31 = sphi 0, %s33
      %s34 = sphi 0, %s31
      %s35 = sphi 0, %s34
      %s51 = sphi 0, %s35
      %s57 = sphi 0, %s59
      %s60 = sphi 0, %s57
      %s61 = sphi 0, %s60
      %s77 = sphi 0, %s61
      %s81 = sphi 0, %s81
      %s83 = sphi 0, %s81
      %s84 = sphi 0, %s83
      %s98 = sphi 0, %s84
      %s102 = sphi 0, %s102
      %s104 = sphi 0, %s102
      %s105 = sphi 0, %s104
      %s119 = sphi 0, %s105
      %s123 = sphi 0, %s123
      %s125 = sphi 0, %s123
      %s126 = sphi 0, %s125
      %s140 = sphi 0, %s126
      %s144 = sphi 0, %s144
      %s146 = sphi 0, %s144
      %s147 = sphi 0, %s146
      %s161 = sphi 0, %s147
      %s165 = sphi 0, %s165
      %s167 = sphi 0, %s165
      %s168 = sphi 0, %s167
      %s182 = sphi 0, %s168
      %s186 = sphi 0, %s186
      %s188 = sphi 0, %s186
      %s189 = sphi 0, %s188
      %s203 = sphi 0, %s189
      %s207 = sphi 0, %s207
      %s209 = sphi 0, %s207
      %s210 = sphi 0, %s209
      %s224 = sphi 0, %s210
      %s228 = sphi 0, %s228
      %s230 = sphi 0, %s228
      %s231 = sphi 0, %s230
      %s245 = sphi 0, %s231
      %s251 = sphi 0, %s253
      %s254 = sphi 0, %s251
      %s255 = sphi 0, %s254
      %s271 = sphi 0, %s255
    $region4: #{render_pallas.1} parent=1 // loop_header_branch
      %24 = sbr.rel (%p22) target = $region8
    $region5: #{render_pallas.1} parent=1 // loop_body
      %s26 = ssub.s32 %s21, 1
      %s27 = ssub.s32 %s21, 2
      %s28 = sadd.s32 %s21, 1
      %s29 = ssub.s32 %s21, %s28
      %p30 = scmp.eq.s32.totalorder %s29, 0
      %s32 = sadd.s32 %s31, 1
      %s33 = scalar_select %p30, %s31, %s32
      %p36 = pneg %p30
      %p37 = scmp.eq.s32.totalorder %s21, 1
      %p38 = por %p36, %p37
      %p39 = scmp.ne.s32.totalorder %s31, %s34
      %p40 = scmp.eq.s32.totalorder %s21, 0
      %p41 = por %p39, %p40
      %p42 = scmp.ne.s32.totalorder %s31, %s34
      %p43 = scmp.eq.s32.totalorder %s26, 1
      %p44 = por %p42, %p43
      %p45 = scmp.ne.s32.totalorder %s34, %s35
      %p46 = scmp.eq.s32.totalorder %s26, 0
      %p47 = por %p45, %p46
      %p48 = scmp.ne.s32.totalorder %s34, %s35
      %p49 = scmp.eq.s32.totalorder %s27, 1
      %p50 = por %p48, %p49
      %p52 = scmp.ne.s32.totalorder %s35, %s51
      %p53 = scmp.eq.s32.totalorder %s27, 0
      %p54 = por %p52, %p53
      %s55 = ssub.s32 %s21, %s28
      %p56 = scmp.eq.s32.totalorder %s55, 0
      %s58 = sadd.s32 %s57, 1
      %s59 = scalar_select %p56, %s57, %s58
      %p62 = pneg %p56
      %p63 = scmp.eq.s32.totalorder %s21, 1
      %p64 = por %p62, %p63
      %p65 = scmp.ne.s32.totalorder %s57, %s60
      %p66 = scmp.eq.s32.totalorder %s21, 0
      %p67 = por %p65, %p66
      %p68 = scmp.ne.s32.totalorder %s57, %s60
      %p69 = scmp.eq.s32.totalorder %s26, 1
      %p70 = por %p68, %p69
      %p71 = scmp.ne.s32.totalorder %s60, %s61
      %p72 = scmp.eq.s32.totalorder %s26, 0
      %p73 = por %p71, %p72
      %p74 = scmp.ne.s32.totalorder %s60, %s61
      %p75 = scmp.eq.s32.totalorder %s27, 1
      %p76 = por %p74, %p75
      %p78 = scmp.ne.s32.totalorder %s61, %s77
      %p79 = scmp.eq.s32.totalorder %s27, 0
      %p80 = por %p78, %p79
      %s82 = sadd.s32 %s81, 1
      %p85 = scmp.eq.s32.totalorder %s21, 1
      %p86 = scmp.ne.s32.totalorder %s81, %s83
      %p87 = scmp.eq.s32.totalorder %s21, 0
      %p88 = por %p86, %p87
      %p89 = scmp.ne.s32.totalorder %s81, %s83
      %p90 = scmp.eq.s32.totalorder %s26, 1
      %p91 = por %p89, %p90
      %p92 = scmp.ne.s32.totalorder %s83, %s84
      %p93 = scmp.eq.s32.totalorder %s26, 0
      %p94 = por %p92, %p93
      %p95 = scmp.ne.s32.totalorder %s83, %s84
      %p96 = scmp.eq.s32.totalorder %s27, 1
      %p97 = por %p95, %p96
      %p99 = scmp.ne.s32.totalorder %s84, %s98
      %p100 = scmp.eq.s32.totalorder %s27, 0
      %p101 = por %p99, %p100
      %s103 = sadd.s32 %s102, 1
      %p106 = scmp.eq.s32.totalorder %s21, 1
      %p107 = scmp.ne.s32.totalorder %s102, %s104
      %p108 = scmp.eq.s32.totalorder %s21, 0
      %p109 = por %p107, %p108
      %p110 = scmp.ne.s32.totalorder %s102, %s104
      %p111 = scmp.eq.s32.totalorder %s26, 1
      %p112 = por %p110, %p111
      %p113 = scmp.ne.s32.totalorder %s104, %s105
      %p114 = scmp.eq.s32.totalorder %s26, 0
      %p115 = por %p113, %p114
      %p116 = scmp.ne.s32.totalorder %s104, %s105
      %p117 = scmp.eq.s32.totalorder %s27, 1
      %p118 = por %p116, %p117
      %p120 = scmp.ne.s32.totalorder %s105, %s119
      %p121 = scmp.eq.s32.totalorder %s27, 0
      %p122 = por %p120, %p121
      %s124 = sadd.s32 %s123, 1
      %p127 = scmp.eq.s32.totalorder %s21, 1
      %p128 = scmp.ne.s32.totalorder %s123, %s125
      %p129 = scmp.eq.s32.totalorder %s21, 0
      %p130 = por %p128, %p129
      %p131 = scmp.ne.s32.totalorder %s123, %s125
      %p132 = scmp.eq.s32.totalorder %s26, 1
      %p133 = por %p131, %p132
      %p134 = scmp.ne.s32.totalorder %s125, %s126
      %p135 = scmp.eq.s32.totalorder %s26, 0
      %p136 = por %p134, %p135
      %p137 = scmp.ne.s32.totalorder %s125, %s126
      %p138 = scmp.eq.s32.totalorder %s27, 1
      %p139 = por %p137, %p138
      %p141 = scmp.ne.s32.totalorder %s126, %s140
      %p142 = scmp.eq.s32.totalorder %s27, 0
      %p143 = por %p141, %p142
      %s145 = sadd.s32 %s144, 1
      %p148 = scmp.eq.s32.totalorder %s21, 1
      %p149 = scmp.ne.s32.totalorder %s144, %s146
      %p150 = scmp.eq.s32.totalorder %s21, 0
      %p151 = por %p149, %p150
      %p152 = scmp.ne.s32.totalorder %s144, %s146
      %p153 = scmp.eq.s32.totalorder %s26, 1
      %p154 = por %p152, %p153
      %p155 = scmp.ne.s32.totalorder %s146, %s147
      %p156 = scmp.eq.s32.totalorder %s26, 0
      %p157 = por %p155, %p156
      %p158 = scmp.ne.s32.totalorder %s146, %s147
      %p159 = scmp.eq.s32.totalorder %s27, 1
      %p160 = por %p158, %p159
      %p162 = scmp.ne.s32.totalorder %s147, %s161
      %p163 = scmp.eq.s32.totalorder %s27, 0
      %p164 = por %p162, %p163
      %s166 = sadd.s32 %s165, 1
      %p169 = scmp.eq.s32.totalorder %s21, 1
      %p170 = scmp.ne.s32.totalorder %s165, %s167
      %p171 = scmp.eq.s32.totalorder %s21, 0
      %p172 = por %p170, %p171
      %p173 = scmp.ne.s32.totalorder %s165, %s167
      %p174 = scmp.eq.s32.totalorder %s26, 1
      %p175 = por %p173, %p174
      %p176 = scmp.ne.s32.totalorder %s167, %s168
      %p177 = scmp.eq.s32.totalorder %s26, 0
      %p178 = por %p176, %p177
      %p179 = scmp.ne.s32.totalorder %s167, %s168
      %p180 = scmp.eq.s32.totalorder %s27, 1
      %p181 = por %p179, %p180
      %p183 = scmp.ne.s32.totalorder %s168, %s182
      %p184 = scmp.eq.s32.totalorder %s27, 0
      %p185 = por %p183, %p184
      %s187 = sadd.s32 %s186, 1
      %p190 = scmp.eq.s32.totalorder %s21, 1
      %p191 = scmp.ne.s32.totalorder %s186, %s188
      %p192 = scmp.eq.s32.totalorder %s21, 0
      %p193 = por %p191, %p192
      %p194 = scmp.ne.s32.totalorder %s186, %s188
      %p195 = scmp.eq.s32.totalorder %s26, 1
      %p196 = por %p194, %p195
      %p197 = scmp.ne.s32.totalorder %s188, %s189
      %p198 = scmp.eq.s32.totalorder %s26, 0
      %p199 = por %p197, %p198
      %p200 = scmp.ne.s32.totalorder %s188, %s189
      %p201 = scmp.eq.s32.totalorder %s27, 1
      %p202 = por %p200, %p201
      %p204 = scmp.ne.s32.totalorder %s189, %s203
      %p205 = scmp.eq.s32.totalorder %s27, 0
      %p206 = por %p204, %p205
      %s208 = sadd.s32 %s207, 1
      %p211 = scmp.eq.s32.totalorder %s21, 1
      %p212 = scmp.ne.s32.totalorder %s207, %s209
      %p213 = scmp.eq.s32.totalorder %s21, 0
      %p214 = por %p212, %p213
      %p215 = scmp.ne.s32.totalorder %s207, %s209
      %p216 = scmp.eq.s32.totalorder %s26, 1
      %p217 = por %p215, %p216
      %p218 = scmp.ne.s32.totalorder %s209, %s210
      %p219 = scmp.eq.s32.totalorder %s26, 0
      %p220 = por %p218, %p219
      %p221 = scmp.ne.s32.totalorder %s209, %s210
      %p222 = scmp.eq.s32.totalorder %s27, 1
      %p223 = por %p221, %p222
      %p225 = scmp.ne.s32.totalorder %s210, %s224
      %p226 = scmp.eq.s32.totalorder %s27, 0
      %p227 = por %p225, %p226
      %s229 = sadd.s32 %s228, 1
      %p232 = scmp.eq.s32.totalorder %s21, 1
      %p233 = scmp.ne.s32.totalorder %s228, %s230
      %p234 = scmp.eq.s32.totalorder %s21, 0
      %p235 = por %p233, %p234
      %p236 = scmp.ne.s32.totalorder %s228, %s230
      %p237 = scmp.eq.s32.totalorder %s26, 1
      %p238 = por %p236, %p237
      %p239 = scmp.ne.s32.totalorder %s230, %s231
      %p240 = scmp.eq.s32.totalorder %s26, 0
      %p241 = por %p239, %p240
      %p242 = scmp.ne.s32.totalorder %s230, %s231
      %p243 = scmp.eq.s32.totalorder %s27, 1
      %p244 = por %p242, %p243
      %p246 = scmp.ne.s32.totalorder %s231, %s245
      %p247 = scmp.eq.s32.totalorder %s27, 0
      %p248 = por %p246, %p247
      %s249 = ssub.s32 %s21, %s28
      %p250 = scmp.eq.s32.totalorder %s249, 0
      %s252 = sadd.s32 %s251, 1
      %s253 = scalar_select %p250, %s251, %s252
      %p256 = pneg %p250
      %p257 = scmp.eq.s32.totalorder %s21, 1
      %p258 = por %p256, %p257
      %p259 = scmp.ne.s32.totalorder %s251, %s254
      %p260 = scmp.eq.s32.totalorder %s21, 0
      %p261 = por %p259, %p260
      %p262 = scmp.ne.s32.totalorder %s251, %s254
      %p263 = scmp.eq.s32.totalorder %s26, 1
      %p264 = por %p262, %p263
      %p265 = scmp.ne.s32.totalorder %s254, %s255
      %p266 = scmp.eq.s32.totalorder %s26, 0
      %p267 = por %p265, %p266
      %p268 = scmp.ne.s32.totalorder %s254, %s255
      %p269 = scmp.eq.s32.totalorder %s27, 1
      %p270 = por %p268, %p269
      %p272 = scmp.ne.s32.totalorder %s255, %s271
      %p273 = scmp.eq.s32.totalorder %s27, 0
      %p274 = por %p272, %p273
      %p275 = scmp.le.s32.totalorder 1, %s21
      %p276 = scmp.lt.s32.totalorder %s21, 3
      %p277 = pnand %p275, %p276
      %p278 = pneg %p277
      // Predicated region
      $region9: #{render_pallas.1} parent=5 // pred_check
        _
      $region10: #{render_pallas.1} parent=5 // pred_check_branch
        %280 = sbr.rel (%p277) target = $region12
      $region11: #{render_pallas.1} parent=5 // pred_region
        %s281 = ssub.s32 %s21, 1
        // Predicated region
        $region13: #{render_pallas.1} parent=11 // pred_check
          %p282 = pneg %p94
        $region14: #{render_pallas.1} parent=11 // pred_check_branch
          %284 = sbr.rel (%p282) target = $region16
        $region15: #{render_pallas.1} parent=11 // pred_region
          _
        $region16: #{render_pallas.1} parent=11 // pred_fallthru
          _
        // Predicated region
        $region17: #{render_pallas.1} parent=11 // pred_check
          %p285 = pneg %p115
        $region18: #{render_pallas.1} parent=11 // pred_check_branch
          %287 = sbr.rel (%p285) target = $region20
        $region19: #{render_pallas.1} parent=11 // pred_region
          _
        $region20: #{render_pallas.1} parent=11 // pred_fallthru
          _
        // Predicated region
        $region21: #{render_pallas.1} parent=11 // pred_check
          %p288 = pneg %p136
        $region22: #{render_pallas.1} parent=11 // pred_check_branch
          %290 = sbr.rel (%p288) target = $region24
        $region23: #{render_pallas.1} parent=11 // pred_region
          _
        $region24: #{render_pallas.1} parent=11 // pred_fallthru
          _
        // Predicated region
        $region25: #{render_pallas.1} parent=11 // pred_check
          %p291 = pneg %p157
        $region26: #{render_pallas.1} parent=11 // pred_check_branch
          %293 = sbr.rel (%p291) target = $region28
        $region27: #{render_pallas.1} parent=11 // pred_region
          _
        $region28: #{render_pallas.1} parent=11 // pred_fallthru
          _
        // Predicated region
        $region29: #{render_pallas.1} parent=11 // pred_check
          %p294 = pneg %p178
        $region30: #{render_pallas.1} parent=11 // pred_check_branch
          %296 = sbr.rel (%p294) target = $region32
        $region31: #{render_pallas.1} parent=11 // pred_region
          _
        $region32: #{render_pallas.1} parent=11 // pred_fallthru
          _
        // Predicated region
        $region33: #{render_pallas.1} parent=11 // pred_check
          %p297 = pneg %p199
        $region34: #{render_pallas.1} parent=11 // pred_check_branch
          %299 = sbr.rel (%p297) target = $region36
        $region35: #{render_pallas.1} parent=11 // pred_region
          _
        $region36: #{render_pallas.1} parent=11 // pred_fallthru
          _
        // Predicated region
        $region37: #{render_pallas.1} parent=11 // pred_check
          %p300 = pneg %p220
        $region38: #{render_pallas.1} parent=11 // pred_check_branch
          %302 = sbr.rel (%p300) target = $region40
        $region39: #{render_pallas.1} parent=11 // pred_region
          _
        $region40: #{render_pallas.1} parent=11 // pred_fallthru
          _
        // Predicated region
        $region41: #{render_pallas.1} parent=11 // pred_check
          %p303 = pneg %p241
        $region42: #{render_pallas.1} parent=11 // pred_check_branch
          %305 = sbr.rel (%p303) target = $region44
        $region43: #{render_pallas.1} parent=11 // pred_region
          _
        $region44: #{render_pallas.1} parent=11 // pred_fallthru
          _
      $region12: #{render_pallas.1} parent=5 // pred_fallthru
        _
      %p306 = scmp.lt.s32.totalorder %s21, 2
      // Predicated region
      $region45: #{render_pallas.1} parent=5 // pred_check
        %p307 = pneg %p306
      $region46: #{render_pallas.1} parent=5 // pred_check_branch
        %309 = sbr.rel (%p307) target = $region48
      $region47: #{render_pallas.1} parent=5 // pred_region
        // Predicated region
        $region49: #{render_pallas.1} parent=47 // pred_check
          %p310 = pneg %p41
        $region50: #{render_pallas.1} parent=47 // pred_check_branch
          %312 = sbr.rel (%p310) target = $region52
        $region51: #{render_pallas.1} parent=47 // pred_region
          %p313 = scmp.lt.s32.totalorder %s21, 1
          %s314 = scalar_select %p313, %s21, 1
          %s315 = smul.addr %s314, 4
          %s316 = scalar_lea.vmem %s0, %s315
        $region52: #{render_pallas.1} parent=47 // pred_fallthru
          _
        // Predicated region
        $region53: #{render_pallas.1} parent=47 // pred_check
          %p317 = pneg %p67
        $region54: #{render_pallas.1} parent=47 // pred_check_branch
          %319 = sbr.rel (%p317) target = $region56
        $region55: #{render_pallas.1} parent=47 // pred_region
          %p320 = scmp.lt.s32.totalorder %s21, 1
          %s321 = scalar_select %p320, %s21, 1
          %s322 = smul.addr %s321, 4
          %s323 = scalar_lea.vmem %s1, %s322
        $region56: #{render_pallas.1} parent=47 // pred_fallthru
          _
      $region48: #{render_pallas.1} parent=5 // pred_fallthru
        _
      %p324 = scmp.le.s32.totalorder 1, %s21
      %p325 = scmp.lt.s32.totalorder %s21, 3
      %p326 = pnand %p324, %p325
      %p327 = pneg %p326
      // Predicated region
      $region57: #{render_pallas.1} parent=5 // pred_check
        _
      $region58: #{render_pallas.1} parent=5 // pred_check_branch
        %329 = sbr.rel (%p326) target = $region60
      $region59: #{render_pallas.1} parent=5 // pred_region
        %s330 = ssub.s32 %s21, 1
        %p331 = scmp.lt.s32.totalorder %s26, 1
        %s332 = scalar_select %p331, %s26, 1
        %s333 = smul.addr %s332, 4
        %s334 = scalar_lea.vmem %s0, %s333
        %p335 = pneg %p47
        %p336 = pneg %p44
        %p337 = scmp.lt.s32.totalorder %s26, 1
        %s338 = scalar_select %p337, %s26, 1
        %s339 = smul.addr %s338, 4
        %s340 = scalar_lea.vmem %s1, %s339
        %p341 = pneg %p73
        %p342 = pneg %p70
        %p343 = pneg %p94
        %p344 = pneg %p91
        %p345 = pneg %p115
        %p346 = pneg %p112
        %p347 = pneg %p136
        %p348 = pneg %p133
        %p349 = pneg %p157
        %p350 = pneg %p154
        %p351 = pneg %p178
        %p352 = pneg %p175
        %p353 = pneg %p199
        %p354 = pneg %p196
        %p355 = pneg %p220
        %p356 = pneg %p217
        %p357 = pneg %p241
        %p358 = pneg %p238
        %p359 = pneg %p267
        %p360 = pneg %p264
        %s361 = sand.u32 %s254, 1
        %s362 = scalar_lea.sflag [#allocation4], %s361
        %s363 = sand.u32 %s254, 1
        %s364 = smul.addr %s363, 8
        %s365 = scalar_lea.vmem [#allocation3], %s364
        %p366 = scmp.lt.s32.totalorder %s26, 1
        %s367 = scalar_select %p366, %s26, 1
        %s368 = smul.addr %s367, 4
        %s369 = scalar_lea.vmem %s0, %s368
        %p370 = scmp.lt.s32.totalorder %s26, 1
        %s371 = scalar_select %p370, %s26, 1
        %s372 = smul.addr %s371, 4
        %s373 = scalar_lea.vmem %s1, %s372
        %v374 = vld [vmem:[%s369] sm:$0x7]
        %v375 = vld [vmem:[%s373] sm:$0x7]
        %v376 = vld [vmem:[%s2] sm:$0xff]
        %v377 = vld [vmem:[%s2 + $0x8] sm:$0xff]
        %v378 = vld [vmem:[%s2 + $0x10] sm:$0xff]
        %v379 = vld [vmem:[%s2 + $0x18] sm:$0xff]
        %v380 = vld [vmem:[%s3] sm:$0x7]
        %v381 = vld [vmem:[%s4] sm:$0xff]
        %v382 = vld [vmem:[%s4 + $0x8] sm:$0xff]
        %v383 = vld [vmem:[%s4 + $0x10] sm:$0xff]
        %v384 = vld [vmem:[%s4 + $0x18] sm:$0xff]
        %v385 = vld [vmem:[%s5] sm:$0xff]
        %v386 = vld [vmem:[%s5 + $0x8] sm:$0xff]
        %v387 = vld [vmem:[%s5 + $0x10] sm:$0xff]
        %v388 = vld [vmem:[%s5 + $0x18] sm:$0xff]
        %v389 = vld [vmem:[%s6] sm:$0xff]
        %v390 = vld [vmem:[%s6 + $0x8] sm:$0xff]
        %v391 = vld [vmem:[%s6 + $0x10] sm:$0xff]
        %v392 = vld [vmem:[%s6 + $0x18] sm:$0xff]
        %v393 = vld [vmem:[%s7] sm:$0xff]
        %v394 = vld [vmem:[%s7 + $0x8] sm:$0xff]
        %v395 = vld [vmem:[%s7 + $0x10] sm:$0xff]
        %v396 = vld [vmem:[%s7 + $0x18] sm:$0xff]
        %v397 = vld [vmem:[%s8] sm:$0xff]
        %v398 = vld [vmem:[%s8 + $0x8] sm:$0xff]
        %v399 = vld [vmem:[%s8 + $0x10] sm:$0xff]
        %v400 = vld [vmem:[%s8 + $0x18] sm:$0xff]
        %v401 = vld [vmem:[#allocation2] sm:$0x1]
        %403 = vset.pattern.permute.xlu0 0
        %404 = vperm.xlu0 %403, %v381
        %v405 = vpop.permute.xlu0 %404
        %408 = vset.pattern.permute.xlu0 0
        %409 = vperm.xlu0 %408, %v382
        %v410 = vpop.permute.xlu0 %409
        %413 = vset.pattern.permute.xlu0 0
        %414 = vperm.xlu0 %413, %v383
        %v415 = vpop.permute.xlu0 %414
        %418 = vset.pattern.permute.xlu0 0
        %419 = vperm.xlu0 %418, %v384
        %v420 = vpop.permute.xlu0 %419
        %vm422 = vcmask 23552
        %v424 = vsel %vm422, %v376, 0
        %v427 = vsel %vm422, %v377, 0
        %v430 = vsel %vm422, %v378, 0
        %v433 = vsel %vm422, %v379, 0
        %vm435 = vcmask 1042432
        %v437 = vsel %vm435, %v374, 0
        %439 = vmatpush.msra.mxu0 0.0
        %440 = vmatpush.msra.mxu0 0.0
        %441 = vmatpush.msra.mxu0 0.0
        %442 = vmatpush.msra.mxu0 0.0
        %443 = vmatpush.msra.mxu0 0.0
        %444 = vmatpush.msra.mxu0 0.0
        %445 = vmatpush.msra.mxu0 0.0
        %446 = vmatpush.msra.mxu0 0.0
        %447 = vmatpush.msra.mxu0 0.0
        %448 = vmatpush.msra.mxu0 0.0
        %449 = vmatpush.msra.mxu0 0.0
        %450 = vmatpush.msra.mxu0 0.0
        %451 = vmatpush.msra.mxu0 0.0
        %452 = vmatpush.msra.mxu0 0.0
        %453 = vmatpush.msra.mxu0 0.0
        %454 = vmatpush.msra.mxu0 %v437
        %455 = vmatmul.f32.gmra.mxu0 %v424
        %v456 = vpop.f32.mrf.mxu0
        %v457 = vadd.f32 %v405, %v456
        %458 = vmatmul.f32.gmra.mxu0 %v427
        %v459 = vpop.f32.mrf.mxu0
        %v460 = vadd.f32 %v410, %v459
        %461 = vmatmul.f32.gmra.mxu0 %v430
        %v462 = vpop.f32.mrf.mxu0
        %v463 = vadd.f32 %v415, %v462
        %464 = vmatmul.f32.gmra.mxu0 %v433
        %v465 = vpop.f32.mrf.mxu0
        %v466 = vadd.f32 %v420, %v465
        %467 = vdwg.mxu0
        %v469 = vsel %vm435, %v375, 0
        %471 = vmatpush.msra.mxu0 0.0
        %472 = vmatpush.msra.mxu0 0.0
        %473 = vmatpush.msra.mxu0 0.0
        %474 = vmatpush.msra.mxu0 0.0
        %475 = vmatpush.msra.mxu0 0.0
        %476 = vmatpush.msra.mxu0 0.0
        %477 = vmatpush.msra.mxu0 0.0
        %478 = vmatpush.msra.mxu0 0.0
        %479 = vmatpush.msra.mxu0 0.0
        %480 = vmatpush.msra.mxu0 0.0
        %481 = vmatpush.msra.mxu0 0.0
        %482 = vmatpush.msra.mxu0 0.0
        %483 = vmatpush.msra.mxu0 0.0
        %484 = vmatpush.msra.mxu0 0.0
        %485 = vmatpush.msra.mxu0 0.0
        %486 = vmatpush.msra.mxu0 %v469
        %487 = vmatmul.f32.gmra.mxu0 %v424
        %v488 = vpop.f32.mrf.mxu0
        %v489 = vadd.f32 0.0, %v488
        %490 = vmatmul.f32.gmra.mxu0 %v427
        %v491 = vpop.f32.mrf.mxu0
        %v492 = vadd.f32 0.0, %v491
        %493 = vmatmul.f32.gmra.mxu0 %v430
        %v494 = vpop.f32.mrf.mxu0
        %v495 = vadd.f32 0.0, %v494
        %496 = vmatmul.f32.gmra.mxu0 %v433
        %v497 = vpop.f32.mrf.mxu0
        %v498 = vadd.f32 0.0, %v497
        %499 = vdwg.mxu0
        %v500 = vmul.f32 %v489, 0.0
        %v501 = vmul.f32 %v492, 0.0
        %v502 = vmul.f32 %v495, 0.0
        %v503 = vmul.f32 %v498, 0.0
        %v504 = vadd.f32 %v457, %v500
        %v505 = vadd.f32 %v460, %v501
        %v506 = vadd.f32 %v463, %v502
        %v507 = vadd.f32 %v466, %v503
        %v508 = vmax.f32 %v504, 0.0
        %v509 = vmax.f32 %v505, 0.0
        %v510 = vmax.f32 %v506, 0.0
        %v511 = vmax.f32 %v507, 0.0
        %513 = vset.pattern.permute.xlu0 0
        %514 = vperm.xlu0 %513, %v393
        %v515 = vpop.permute.xlu0 %514
        %518 = vset.pattern.permute.xlu0 0
        %519 = vperm.xlu0 %518, %v394
        %v520 = vpop.permute.xlu0 %519
        %523 = vset.pattern.permute.xlu0 0
        %524 = vperm.xlu0 %523, %v395
        %v525 = vpop.permute.xlu0 %524
        %528 = vset.pattern.permute.xlu0 0
        %529 = vperm.xlu0 %528, %v396
        %v530 = vpop.permute.xlu0 %529
        %vm532 = vcmask 261120
        %v534 = vsel %vm532, %v385, 0
        %v537 = vsel %vm532, %v386, 0
        %v540 = vsel %vm532, %v387, 0
        %v543 = vsel %vm532, %v388, 0
        %545 = vmatpush.msra.mxu0 0.0
        %546 = vmatpush.msra.mxu0 0.0
        %547 = vmatpush.msra.mxu0 0.0
        %548 = vmatpush.msra.mxu0 0.0
        %549 = vmatpush.msra.mxu0 0.0
        %550 = vmatpush.msra.mxu0 0.0
        %551 = vmatpush.msra.mxu0 0.0
        %552 = vmatpush.msra.mxu0 0.0
        %553 = vmatpush.msra.mxu0 0.0
        %554 = vmatpush.msra.mxu0 0.0
        %555 = vmatpush.msra.mxu0 0.0
        %556 = vmatpush.msra.mxu0 0.0
        %557 = vmatpush.msra.mxu0 %v511
        %558 = vmatpush.msra.mxu0 %v510
        %559 = vmatpush.msra.mxu0 %v509
        %560 = vmatpush.msra.mxu0 %v508
        %561 = vmatmul.f32.gmra.mxu0 %v534
        %v562 = vpop.f32.mrf.mxu0
        %v563 = vadd.f32 %v515, %v562
        %564 = vmatmul.f32.gmra.mxu0 %v537
        %v565 = vpop.f32.mrf.mxu0
        %v566 = vadd.f32 %v520, %v565
        %567 = vmatmul.f32.gmra.mxu0 %v540
        %v568 = vpop.f32.mrf.mxu0
        %v569 = vadd.f32 %v525, %v568
        %570 = vmatmul.f32.gmra.mxu0 %v543
        %v571 = vpop.f32.mrf.mxu0
        %v572 = vadd.f32 %v530, %v571
        %573 = vdwg.mxu0
        %v574 = vmax.f32 %v563, 0.0
        %v575 = vmax.f32 %v566, 0.0
        %v576 = vmax.f32 %v569, 0.0
        %v577 = vmax.f32 %v572, 0.0
        %579 = vset.pattern.permute.xlu0 0
        %580 = vperm.xlu0 %579, %v397
        %v581 = vpop.permute.xlu0 %580
        %584 = vset.pattern.permute.xlu0 0
        %585 = vperm.xlu0 %584, %v398
        %v586 = vpop.permute.xlu0 %585
        %589 = vset.pattern.permute.xlu0 0
        %590 = vperm.xlu0 %589, %v399
        %v591 = vpop.permute.xlu0 %590
        %594 = vset.pattern.permute.xlu0 0
        %595 = vperm.xlu0 %594, %v400
        %v596 = vpop.permute.xlu0 %595
        %v598 = vmul.f32 %v581, %v574
        %v599 = vmul.f32 %v586, %v575
        %v600 = vmul.f32 %v591, %v576
        %v601 = vmul.f32 %v596, %v577
        %v602 = vadd.f32 %v598, %v599
        %v603 = vadd.f32 %v602, %v600
        %v604 = vadd.f32 %v603, %v601
        %v605 = vrot.slane %v604, 4
        %v606 = vadd.f32 %v604, %v605
        %v607 = vrot.slane %v606, 2
        %v608 = vadd.f32 %v606, %v607
        %v609 = vrot.slane %v608, 1
        %v610 = vadd.f32 %v608, %v609
        %612 = vset.pattern.permute.xlu0 0
        %613 = vperm.xlu0 %612, %v401
        %v614 = vpop.permute.xlu0 %613
        %v616 = vperm.slane %v614, 0
        %v617 = vadd.f32 %v610, %v616
        %v618 = vand.u32 2147483647, %v617
        %vm619 = vcmp.lt.f32.partialorder %v618, 0.0003
        %v620 = vsel %vm619, 1.0, 0.0
        %v621 = vmul.f32 %v617, 0.8
        %v622 = vadd.f32 %v621, 0.0
        %v623 = vmax.f32 %v622, 0.0
        %v624 = vmin.f32 %v623, 5.0
        %vm625 = vcmp.gt.f32.partialorder %v620, 0.0
        %v626 = vsel %vm625, 0.0, %v624
        %v627 = vmul.f32 %v626, %v489
        %v628 = vmul.f32 %v626, %v492
        %v629 = vmul.f32 %v626, %v495
        %v630 = vmul.f32 %v626, %v498
        %v631 = vadd.f32 %v457, %v627
        %v632 = vadd.f32 %v460, %v628
        %v633 = vadd.f32 %v463, %v629
        %v634 = vadd.f32 %v466, %v630
        %v635 = vmax.f32 %v631, 0.0
        %v636 = vmax.f32 %v632, 0.0
        %v637 = vmax.f32 %v633, 0.0
        %v638 = vmax.f32 %v634, 0.0
        %639 = vmatpush.msra.mxu0 0.0
        %640 = vmatpush.msra.mxu0 0.0
        %641 = vmatpush.msra.mxu0 0.0
        %642 = vmatpush.msra.mxu0 0.0
        %643 = vmatpush.msra.mxu0 0.0
        %644 = vmatpush.msra.mxu0 0.0
        %645 = vmatpush.msra.mxu0 0.0
        %646 = vmatpush.msra.mxu0 0.0
        %647 = vmatpush.msra.mxu0 0.0
        %648 = vmatpush.msra.mxu0 0.0
        %649 = vmatpush.msra.mxu0 0.0
        %650 = vmatpush.msra.mxu0 0.0
        %651 = vmatpush.msra.mxu0 %v638
        %652 = vmatpush.msra.mxu0 %v637
        %653 = vmatpush.msra.mxu0 %v636
        %654 = vmatpush.msra.mxu0 %v635
        %655 = vmatmul.f32.gmra.mxu0 %v534
        %v656 = vpop.f32.mrf.mxu0
        %v657 = vadd.f32 %v515, %v656
        %658 = vmatmul.f32.gmra.mxu0 %v537
        %v659 = vpop.f32.mrf.mxu0
        %v660 = vadd.f32 %v520, %v659
        %661 = vmatmul.f32.gmra.mxu0 %v540
        %v662 = vpop.f32.mrf.mxu0
        %v663 = vadd.f32 %v525, %v662
        %664 = vmatmul.f32.gmra.mxu0 %v543
        %v665 = vpop.f32.mrf.mxu0
        %v666 = vadd.f32 %v530, %v665
        %667 = vdwg.mxu0
        %v668 = vmax.f32 %v657, 0.0
        %v669 = vmax.f32 %v660, 0.0
        %v670 = vmax.f32 %v663, 0.0
        %v671 = vmax.f32 %v666, 0.0
        %v672 = vmul.f32 %v581, %v668
        %v673 = vmul.f32 %v586, %v669
        %v674 = vmul.f32 %v591, %v670
        %v675 = vmul.f32 %v596, %v671
        %v676 = vadd.f32 %v672, %v673
        %v677 = vadd.f32 %v676, %v674
        %v678 = vadd.f32 %v677, %v675
        %v679 = vrot.slane %v678, 4
        %v680 = vadd.f32 %v678, %v679
        %v681 = vrot.slane %v680, 2
        %v682 = vadd.f32 %v680, %v681
        %v683 = vrot.slane %v682, 1
        %v684 = vadd.f32 %v682, %v683
        %v685 = vadd.f32 %v684, %v616
        %v686 = vand.u32 2147483647, %v685
        %vm687 = vcmp.lt.f32.partialorder %v686, 0.0003
        %v688 = vsel %vm687, 1.0, %v620
        %v689 = vmul.f32 %v685, 0.8
        %v690 = vadd.f32 %v626, %v689
        %v691 = vmax.f32 %v690, 0.0
        %v692 = vmin.f32 %v691, 5.0
        %vm693 = vcmp.gt.f32.partialorder %v688, 0.0
        %v694 = vsel %vm693, %v626, %v692
        %v695 = vmul.f32 %v694, %v489
        %v696 = vmul.f32 %v694, %v492
        %v697 = vmul.f32 %v694, %v495
        %v698 = vmul.f32 %v694, %v498
        %v699 = vadd.f32 %v457, %v695
        %v700 = vadd.f32 %v460, %v696
        %v701 = vadd.f32 %v463, %v697
        %v702 = vadd.f32 %v466, %v698
        %v703 = vmax.f32 %v699, 0.0
        %v704 = vmax.f32 %v700, 0.0
        %v705 = vmax.f32 %v701, 0.0
        %v706 = vmax.f32 %v702, 0.0
        %707 = vmatpush.msra.mxu0 0.0
        %708 = vmatpush.msra.mxu0 0.0
        %709 = vmatpush.msra.mxu0 0.0
        %710 = vmatpush.msra.mxu0 0.0
        %711 = vmatpush.msra.mxu0 0.0
        %712 = vmatpush.msra.mxu0 0.0
        %713 = vmatpush.msra.mxu0 0.0
        %714 = vmatpush.msra.mxu0 0.0
        %715 = vmatpush.msra.mxu0 0.0
        %716 = vmatpush.msra.mxu0 0.0
        %717 = vmatpush.msra.mxu0 0.0
        %718 = vmatpush.msra.mxu0 0.0
        %719 = vmatpush.msra.mxu0 %v706
        %720 = vmatpush.msra.mxu0 %v705
        %721 = vmatpush.msra.mxu0 %v704
        %722 = vmatpush.msra.mxu0 %v703
        %723 = vmatmul.f32.gmra.mxu0 %v534
        %v724 = vpop.f32.mrf.mxu0
        %v725 = vadd.f32 %v515, %v724
        %726 = vmatmul.f32.gmra.mxu0 %v537
        %v727 = vpop.f32.mrf.mxu0
        %v728 = vadd.f32 %v520, %v727
        %729 = vmatmul.f32.gmra.mxu0 %v540
        %v730 = vpop.f32.mrf.mxu0
        %v731 = vadd.f32 %v525, %v730
        %732 = vmatmul.f32.gmra.mxu0 %v543
        %v733 = vpop.f32.mrf.mxu0
        %v734 = vadd.f32 %v530, %v733
        %735 = vdwg.mxu0
        %v736 = vmax.f32 %v725, 0.0
        %v737 = vmax.f32 %v728, 0.0
        %v738 = vmax.f32 %v731, 0.0
        %v739 = vmax.f32 %v734, 0.0
        %v740 = vmul.f32 %v581, %v736
        %v741 = vmul.f32 %v586, %v737
        %v742 = vmul.f32 %v591, %v738
        %v743 = vmul.f32 %v596, %v739
        %v744 = vadd.f32 %v740, %v741
        %v745 = vadd.f32 %v744, %v742
        %v746 = vadd.f32 %v745, %v743
        %v747 = vrot.slane %v746, 4
        %v748 = vadd.f32 %v746, %v747
        %v749 = vrot.slane %v748, 2
        %v750 = vadd.f32 %v748, %v749
        %v751 = vrot.slane %v750, 1
        %v752 = vadd.f32 %v750, %v751
        %v753 = vadd.f32 %v752, %v616
        %v754 = vand.u32 2147483647, %v753
        %vm755 = vcmp.lt.f32.partialorder %v754, 0.0003
        %v756 = vsel %vm755, 1.0, %v688
        %v757 = vmul.f32 %v753, 0.8
        %v758 = vadd.f32 %v694, %v757
        %v759 = vmax.f32 %v758, 0.0
        %v760 = vmin.f32 %v759, 5.0
        %vm761 = vcmp.gt.f32.partialorder %v756, 0.0
        %v762 = vsel %vm761, %v694, %v760
        %v763 = vmul.f32 %v762, %v489
        %v764 = vmul.f32 %v762, %v492
        %v765 = vmul.f32 %v762, %v495
        %v766 = vmul.f32 %v762, %v498
        %v767 = vadd.f32 %v457, %v763
        %v768 = vadd.f32 %v460, %v764
        %v769 = vadd.f32 %v463, %v765
        %v770 = vadd.f32 %v466, %v766
        %v771 = vmax.f32 %v767, 0.0
        %v772 = vmax.f32 %v768, 0.0
        %v773 = vmax.f32 %v769, 0.0
        %v774 = vmax.f32 %v770, 0.0
        %775 = vmatpush.msra.mxu0 0.0
        %776 = vmatpush.msra.mxu0 0.0
        %777 = vmatpush.msra.mxu0 0.0
        %778 = vmatpush.msra.mxu0 0.0
        %779 = vmatpush.msra.mxu0 0.0
        %780 = vmatpush.msra.mxu0 0.0
        %781 = vmatpush.msra.mxu0 0.0
        %782 = vmatpush.msra.mxu0 0.0
        %783 = vmatpush.msra.mxu0 0.0
        %784 = vmatpush.msra.mxu0 0.0
        %785 = vmatpush.msra.mxu0 0.0
        %786 = vmatpush.msra.mxu0 0.0
        %787 = vmatpush.msra.mxu0 %v774
        %788 = vmatpush.msra.mxu0 %v773
        %789 = vmatpush.msra.mxu0 %v772
        %790 = vmatpush.msra.mxu0 %v771
        %791 = vmatmul.f32.gmra.mxu0 %v534
        %v792 = vpop.f32.mrf.mxu0
        %v793 = vadd.f32 %v515, %v792
        %794 = vmatmul.f32.gmra.mxu0 %v537
        %v795 = vpop.f32.mrf.mxu0
        %v796 = vadd.f32 %v520, %v795
        %797 = vmatmul.f32.gmra.mxu0 %v540
        %v798 = vpop.f32.mrf.mxu0
        %v799 = vadd.f32 %v525, %v798
        %800 = vmatmul.f32.gmra.mxu0 %v543
        %v801 = vpop.f32.mrf.mxu0
        %v802 = vadd.f32 %v530, %v801
        %803 = vdwg.mxu0
        %v804 = vmax.f32 %v793, 0.0
        %v805 = vmax.f32 %v796, 0.0
        %v806 = vmax.f32 %v799, 0.0
        %v807 = vmax.f32 %v802, 0.0
        %v808 = vmul.f32 %v581, %v804
        %v809 = vmul.f32 %v586, %v805
        %v810 = vmul.f32 %v591, %v806
        %v811 = vmul.f32 %v596, %v807
        %v812 = vadd.f32 %v808, %v809
        %v813 = vadd.f32 %v812, %v810
        %v814 = vadd.f32 %v813, %v811
        %v815 = vrot.slane %v814, 4
        %v816 = vadd.f32 %v814, %v815
        %v817 = vrot.slane %v816, 2
        %v818 = vadd.f32 %v816, %v817
        %v819 = vrot.slane %v818, 1
        %v820 = vadd.f32 %v818, %v819
        %v821 = vadd.f32 %v820, %v616
        %v822 = vand.u32 2147483647, %v821
        %vm823 = vcmp.lt.f32.partialorder %v822, 0.0003
        %v824 = vsel %vm823, 1.0, %v756
        %v825 = vmul.f32 %v821, 0.8
        %v826 = vadd.f32 %v762, %v825
        %v827 = vmax.f32 %v826, 0.0
        %v828 = vmin.f32 %v827, 5.0
        %vm829 = vcmp.gt.f32.partialorder %v824, 0.0
        %v830 = vsel %vm829, %v762, %v828
        %v831 = vmul.f32 %v830, %v489
        %v832 = vmul.f32 %v830, %v492
        %v833 = vmul.f32 %v830, %v495
        %v834 = vmul.f32 %v830, %v498
        %v835 = vadd.f32 %v457, %v831
        %v836 = vadd.f32 %v460, %v832
        %v837 = vadd.f32 %v463, %v833
        %v838 = vadd.f32 %v466, %v834
        %v839 = vmax.f32 %v835, 0.0
        %v840 = vmax.f32 %v836, 0.0
        %v841 = vmax.f32 %v837, 0.0
        %v842 = vmax.f32 %v838, 0.0
        %843 = vmatpush.msra.mxu0 0.0
        %844 = vmatpush.msra.mxu0 0.0
        %845 = vmatpush.msra.mxu0 0.0
        %846 = vmatpush.msra.mxu0 0.0
        %847 = vmatpush.msra.mxu0 0.0
        %848 = vmatpush.msra.mxu0 0.0
        %849 = vmatpush.msra.mxu0 0.0
        %850 = vmatpush.msra.mxu0 0.0
        %851 = vmatpush.msra.mxu0 0.0
        %852 = vmatpush.msra.mxu0 0.0
        %853 = vmatpush.msra.mxu0 0.0
        %854 = vmatpush.msra.mxu0 0.0
        %855 = vmatpush.msra.mxu0 %v842
        %856 = vmatpush.msra.mxu0 %v841
        %857 = vmatpush.msra.mxu0 %v840
        %858 = vmatpush.msra.mxu0 %v839
        %859 = vmatmul.f32.gmra.mxu0 %v534
        %v860 = vpop.f32.mrf.mxu0
        %v861 = vadd.f32 %v515, %v860
        %862 = vmatmul.f32.gmra.mxu0 %v537
        %v863 = vpop.f32.mrf.mxu0
        %v864 = vadd.f32 %v520, %v863
        %865 = vmatmul.f32.gmra.mxu0 %v540
        %v866 = vpop.f32.mrf.mxu0
        %v867 = vadd.f32 %v525, %v866
        %868 = vmatmul.f32.gmra.mxu0 %v543
        %v869 = vpop.f32.mrf.mxu0
        %v870 = vadd.f32 %v530, %v869
        %871 = vdwg.mxu0
        %v872 = vmax.f32 %v861, 0.0
        %v873 = vmax.f32 %v864, 0.0
        %v874 = vmax.f32 %v867, 0.0
        %v875 = vmax.f32 %v870, 0.0
        %v876 = vmul.f32 %v581, %v872
        %v877 = vmul.f32 %v586, %v873
        %v878 = vmul.f32 %v591, %v874
        %v879 = vmul.f32 %v596, %v875
        %v880 = vadd.f32 %v876, %v877
        %v881 = vadd.f32 %v880, %v878
        %v882 = vadd.f32 %v881, %v879
        %v883 = vrot.slane %v882, 4
        %v884 = vadd.f32 %v882, %v883
        %v885 = vrot.slane %v884, 2
        %v886 = vadd.f32 %v884, %v885
        %v887 = vrot.slane %v886, 1
        %v888 = vadd.f32 %v886, %v887
        %v889 = vadd.f32 %v888, %v616
        %v890 = vand.u32 2147483647, %v889
        %vm891 = vcmp.lt.f32.partialorder %v890, 0.0003
        %v892 = vsel %vm891, 1.0, %v824
        %v893 = vmul.f32 %v889, 0.8
        %v894 = vadd.f32 %v830, %v893
        %v895 = vmax.f32 %v894, 0.0
        %v896 = vmin.f32 %v895, 5.0
        %vm897 = vcmp.gt.f32.partialorder %v892, 0.0
        %v898 = vsel %vm897, %v830, %v896
        %v899 = vmul.f32 %v898, %v489
        %v900 = vmul.f32 %v898, %v492
        %v901 = vmul.f32 %v898, %v495
        %v902 = vmul.f32 %v898, %v498
        %v903 = vadd.f32 %v457, %v899
        %v904 = vadd.f32 %v460, %v900
        %v905 = vadd.f32 %v463, %v901
        %v906 = vadd.f32 %v466, %v902
        %v907 = vmax.f32 %v903, 0.0
        %v908 = vmax.f32 %v904, 0.0
        %v909 = vmax.f32 %v905, 0.0
        %v910 = vmax.f32 %v906, 0.0
        %911 = vmatpush.msra.mxu0 0.0
        %912 = vmatpush.msra.mxu0 0.0
        %913 = vmatpush.msra.mxu0 0.0
        %914 = vmatpush.msra.mxu0 0.0
        %915 = vmatpush.msra.mxu0 0.0
        %916 = vmatpush.msra.mxu0 0.0
        %917 = vmatpush.msra.mxu0 0.0
        %918 = vmatpush.msra.mxu0 0.0
        %919 = vmatpush.msra.mxu0 0.0
        %920 = vmatpush.msra.mxu0 0.0
        %921 = vmatpush.msra.mxu0 0.0
        %922 = vmatpush.msra.mxu0 0.0
        %923 = vmatpush.msra.mxu0 %v910
        %924 = vmatpush.msra.mxu0 %v909
        %925 = vmatpush.msra.mxu0 %v908
        %926 = vmatpush.msra.mxu0 %v907
        %927 = vmatmul.f32.gmra.mxu0 %v534
        %v928 = vpop.f32.mrf.mxu0
        %v929 = vadd.f32 %v515, %v928
        %930 = vmatmul.f32.gmra.mxu0 %v537
        %v931 = vpop.f32.mrf.mxu0
        %v932 = vadd.f32 %v520, %v931
        %933 = vmatmul.f32.gmra.mxu0 %v540
        %v934 = vpop.f32.mrf.mxu0
        %v935 = vadd.f32 %v525, %v934
        %936 = vmatmul.f32.gmra.mxu0 %v543
        %v937 = vpop.f32.mrf.mxu0
        %v938 = vadd.f32 %v530, %v937
        %939 = vdwg.mxu0
        %v940 = vmax.f32 %v929, 0.0
        %v941 = vmax.f32 %v932, 0.0
        %v942 = vmax.f32 %v935, 0.0
        %v943 = vmax.f32 %v938, 0.0
        %v944 = vmul.f32 %v581, %v940
        %v945 = vmul.f32 %v586, %v941
        %v946 = vmul.f32 %v591, %v942
        %v947 = vmul.f32 %v596, %v943
        %v948 = vadd.f32 %v944, %v945
        %v949 = vadd.f32 %v948, %v946
        %v950 = vadd.f32 %v949, %v947
        %v951 = vrot.slane %v950, 4
        %v952 = vadd.f32 %v950, %v951
        %v953 = vrot.slane %v952, 2
        %v954 = vadd.f32 %v952, %v953
        %v955 = vrot.slane %v954, 1
        %v956 = vadd.f32 %v954, %v955
        %v957 = vadd.f32 %v956, %v616
        %v958 = vand.u32 2147483647, %v957
        %vm959 = vcmp.lt.f32.partialorder %v958, 0.0003
        %v960 = vsel %vm959, 1.0, %v892
        %v961 = vmul.f32 %v957, 0.8
        %v962 = vadd.f32 %v898, %v961
        %v963 = vmax.f32 %v962, 0.0
        %v964 = vmin.f32 %v963, 5.0
        %vm965 = vcmp.gt.f32.partialorder %v960, 0.0
        %v966 = vsel %vm965, %v898, %v964
        %v967 = vmul.f32 %v966, %v489
        %v968 = vmul.f32 %v966, %v492
        %v969 = vmul.f32 %v966, %v495
        %v970 = vmul.f32 %v966, %v498
        %v971 = vadd.f32 %v457, %v967
        %v972 = vadd.f32 %v460, %v968
        %v973 = vadd.f32 %v463, %v969
        %v974 = vadd.f32 %v466, %v970
        %v975 = vmax.f32 %v971, 0.0
        %v976 = vmax.f32 %v972, 0.0
        %v977 = vmax.f32 %v973, 0.0
        %v978 = vmax.f32 %v974, 0.0
        %979 = vmatpush.msra.mxu0 0.0
        %980 = vmatpush.msra.mxu0 0.0
        %981 = vmatpush.msra.mxu0 0.0
        %982 = vmatpush.msra.mxu0 0.0
        %983 = vmatpush.msra.mxu0 0.0
        %984 = vmatpush.msra.mxu0 0.0
        %985 = vmatpush.msra.mxu0 0.0
        %986 = vmatpush.msra.mxu0 0.0
        %987 = vmatpush.msra.mxu0 0.0
        %988 = vmatpush.msra.mxu0 0.0
        %989 = vmatpush.msra.mxu0 0.0
        %990 = vmatpush.msra.mxu0 0.0
        %991 = vmatpush.msra.mxu0 %v978
        %992 = vmatpush.msra.mxu0 %v977
        %993 = vmatpush.msra.mxu0 %v976
        %994 = vmatpush.msra.mxu0 %v975
        %995 = vmatmul.f32.gmra.mxu0 %v534
        %v996 = vpop.f32.mrf.mxu0
        %v997 = vadd.f32 %v515, %v996
        %998 = vmatmul.f32.gmra.mxu0 %v537
        %v999 = vpop.f32.mrf.mxu0
        %v1000 = vadd.f32 %v520, %v999
        %1001 = vmatmul.f32.gmra.mxu0 %v540
        %v1002 = vpop.f32.mrf.mxu0
        %v1003 = vadd.f32 %v525, %v1002
        %1004 = vmatmul.f32.gmra.mxu0 %v543
        %v1005 = vpop.f32.mrf.mxu0
        %v1006 = vadd.f32 %v530, %v1005
        %1007 = vdwg.mxu0
        %v1008 = vmax.f32 %v997, 0.0
        %v1009 = vmax.f32 %v1000, 0.0
        %v1010 = vmax.f32 %v1003, 0.0
        %v1011 = vmax.f32 %v1006, 0.0
        %v1012 = vmul.f32 %v581, %v1008
        %v1013 = vmul.f32 %v586, %v1009
        %v1014 = vmul.f32 %v591, %v1010
        %v1015 = vmul.f32 %v596, %v1011
        %v1016 = vadd.f32 %v1012, %v1013
        %v1017 = vadd.f32 %v1016, %v1014
        %v1018 = vadd.f32 %v1017, %v1015
        %v1019 = vrot.slane %v1018, 4
        %v1020 = vadd.f32 %v1018, %v1019
        %v1021 = vrot.slane %v1020, 2
        %v1022 = vadd.f32 %v1020, %v1021
        %v1023 = vrot.slane %v1022, 1
        %v1024 = vadd.f32 %v1022, %v1023
        %v1025 = vadd.f32 %v1024, %v616
        %v1026 = vand.u32 2147483647, %v1025
        %vm1027 = vcmp.lt.f32.partialorder %v1026, 0.0003
        %v1028 = vsel %vm1027, 1.0, %v960
        %v1029 = vmul.f32 %v1025, 0.8
        %v1030 = vadd.f32 %v966, %v1029
        %v1031 = vmax.f32 %v1030, 0.0
        %v1032 = vmin.f32 %v1031, 5.0
        %vm1033 = vcmp.gt.f32.partialorder %v1028, 0.0
        %v1034 = vsel %vm1033, %v966, %v1032
        %v1035 = vmul.f32 %v1034, %v489
        %v1036 = vmul.f32 %v1034, %v492
        %v1037 = vmul.f32 %v1034, %v495
        %v1038 = vmul.f32 %v1034, %v498
        %v1039 = vadd.f32 %v457, %v1035
        %v1040 = vadd.f32 %v460, %v1036
        %v1041 = vadd.f32 %v463, %v1037
        %v1042 = vadd.f32 %v466, %v1038
        %v1043 = vmax.f32 %v1039, 0.0
        %v1044 = vmax.f32 %v1040, 0.0
        %v1045 = vmax.f32 %v1041, 0.0
        %v1046 = vmax.f32 %v1042, 0.0
        %1047 = vmatpush.msra.mxu0 0.0
        %1048 = vmatpush.msra.mxu0 0.0
        %1049 = vmatpush.msra.mxu0 0.0
        %1050 = vmatpush.msra.mxu0 0.0
        %1051 = vmatpush.msra.mxu0 0.0
        %1052 = vmatpush.msra.mxu0 0.0
        %1053 = vmatpush.msra.mxu0 0.0
        %1054 = vmatpush.msra.mxu0 0.0
        %1055 = vmatpush.msra.mxu0 0.0
        %1056 = vmatpush.msra.mxu0 0.0
        %1057 = vmatpush.msra.mxu0 0.0
        %1058 = vmatpush.msra.mxu0 0.0
        %1059 = vmatpush.msra.mxu0 %v1046
        %1060 = vmatpush.msra.mxu0 %v1045
        %1061 = vmatpush.msra.mxu0 %v1044
        %1062 = vmatpush.msra.mxu0 %v1043
        %1063 = vmatmul.f32.gmra.mxu0 %v534
        %v1064 = vpop.f32.mrf.mxu0
        %v1065 = vadd.f32 %v515, %v1064
        %1066 = vmatmul.f32.gmra.mxu0 %v537
        %v1067 = vpop.f32.mrf.mxu0
        %v1068 = vadd.f32 %v520, %v1067
        %1069 = vmatmul.f32.gmra.mxu0 %v540
        %v1070 = vpop.f32.mrf.mxu0
        %v1071 = vadd.f32 %v525, %v1070
        %1072 = vmatmul.f32.gmra.mxu0 %v543
        %v1073 = vpop.f32.mrf.mxu0
        %v1074 = vadd.f32 %v530, %v1073
        %1075 = vdwg.mxu0
        %v1076 = vmax.f32 %v1065, 0.0
        %v1077 = vmax.f32 %v1068, 0.0
        %v1078 = vmax.f32 %v1071, 0.0
        %v1079 = vmax.f32 %v1074, 0.0
        %v1080 = vmul.f32 %v581, %v1076
        %v1081 = vmul.f32 %v586, %v1077
        %v1082 = vmul.f32 %v591, %v1078
        %v1083 = vmul.f32 %v596, %v1079
        %v1084 = vadd.f32 %v1080, %v1081
        %v1085 = vadd.f32 %v1084, %v1082
        %v1086 = vadd.f32 %v1085, %v1083
        %v1087 = vrot.slane %v1086, 4
        %v1088 = vadd.f32 %v1086, %v1087
        %v1089 = vrot.slane %v1088, 2
        %v1090 = vadd.f32 %v1088, %v1089
        %v1091 = vrot.slane %v1090, 1
        %v1092 = vadd.f32 %v1090, %v1091
        %v1093 = vadd.f32 %v1092, %v616
        %v1094 = vand.u32 2147483647, %v1093
        %vm1095 = vcmp.lt.f32.partialorder %v1094, 0.0003
        %v1096 = vsel %vm1095, 1.0, %v1028
        %v1097 = vmul.f32 %v1093, 0.8
        %v1098 = vadd.f32 %v1034, %v1097
        %v1099 = vmax.f32 %v1098, 0.0
        %v1100 = vmin.f32 %v1099, 5.0
        %vm1101 = vcmp.gt.f32.partialorder %v1096, 0.0
        %v1102 = vsel %vm1101, %v1034, %v1100
        %v1103 = vmul.f32 %v1102, %v489
        %v1104 = vmul.f32 %v1102, %v492
        %v1105 = vmul.f32 %v1102, %v495
        %v1106 = vmul.f32 %v1102, %v498
        %v1107 = vadd.f32 %v457, %v1103
        %v1108 = vadd.f32 %v460, %v1104
        %v1109 = vadd.f32 %v463, %v1105
        %v1110 = vadd.f32 %v466, %v1106
        %v1111 = vmax.f32 %v1107, 0.0
        %v1112 = vmax.f32 %v1108, 0.0
        %v1113 = vmax.f32 %v1109, 0.0
        %v1114 = vmax.f32 %v1110, 0.0
        %1115 = vmatpush.msra.mxu0 0.0
        %1116 = vmatpush.msra.mxu0 0.0
        %1117 = vmatpush.msra.mxu0 0.0
        %1118 = vmatpush.msra.mxu0 0.0
        %1119 = vmatpush.msra.mxu0 0.0
        %1120 = vmatpush.msra.mxu0 0.0
        %1121 = vmatpush.msra.mxu0 0.0
        %1122 = vmatpush.msra.mxu0 0.0
        %1123 = vmatpush.msra.mxu0 0.0
        %1124 = vmatpush.msra.mxu0 0.0
        %1125 = vmatpush.msra.mxu0 0.0
        %1126 = vmatpush.msra.mxu0 0.0
        %1127 = vmatpush.msra.mxu0 %v1114
        %1128 = vmatpush.msra.mxu0 %v1113
        %1129 = vmatpush.msra.mxu0 %v1112
        %1130 = vmatpush.msra.mxu0 %v1111
        %1131 = vmatmul.f32.gmra.mxu0 %v534
        %v1132 = vpop.f32.mrf.mxu0
        %v1133 = vadd.f32 %v515, %v1132
        %1134 = vmatmul.f32.gmra.mxu0 %v537
        %v1135 = vpop.f32.mrf.mxu0
        %v1136 = vadd.f32 %v520, %v1135
        %1137 = vmatmul.f32.gmra.mxu0 %v540
        %v1138 = vpop.f32.mrf.mxu0
        %v1139 = vadd.f32 %v525, %v1138
        %1140 = vmatmul.f32.gmra.mxu0 %v543
        %v1141 = vpop.f32.mrf.mxu0
        %v1142 = vadd.f32 %v530, %v1141
        %1143 = vdwg.mxu0
        %v1144 = vmax.f32 %v1133, 0.0
        %v1145 = vmax.f32 %v1136, 0.0
        %v1146 = vmax.f32 %v1139, 0.0
        %v1147 = vmax.f32 %v1142, 0.0
        %v1148 = vmul.f32 %v581, %v1144
        %v1149 = vmul.f32 %v586, %v1145
        %v1150 = vmul.f32 %v591, %v1146
        %v1151 = vmul.f32 %v596, %v1147
        %v1152 = vadd.f32 %v1148, %v1149
        %v1153 = vadd.f32 %v1152, %v1150
        %v1154 = vadd.f32 %v1153, %v1151
        %v1155 = vrot.slane %v1154, 4
        %v1156 = vadd.f32 %v1154, %v1155
        %v1157 = vrot.slane %v1156, 2
        %v1158 = vadd.f32 %v1156, %v1157
        %v1159 = vrot.slane %v1158, 1
        %v1160 = vadd.f32 %v1158, %v1159
        %v1161 = vadd.f32 %v1160, %v616
        %v1162 = vand.u32 2147483647, %v1161
        %vm1163 = vcmp.lt.f32.partialorder %v1162, 0.0003
        %v1164 = vsel %vm1163, 1.0, %v1096
        %v1165 = vmul.f32 %v1161, 0.8
        %v1166 = vadd.f32 %v1102, %v1165
        %v1167 = vmax.f32 %v1166, 0.0
        %v1168 = vmin.f32 %v1167, 5.0
        %vm1169 = vcmp.gt.f32.partialorder %v1164, 0.0
        %v1170 = vsel %vm1169, %v1102, %v1168
        %v1171 = vmul.f32 %v1170, %v489
        %v1172 = vmul.f32 %v1170, %v492
        %v1173 = vmul.f32 %v1170, %v495
        %v1174 = vmul.f32 %v1170, %v498
        %v1175 = vadd.f32 %v457, %v1171
        %v1176 = vadd.f32 %v460, %v1172
        %v1177 = vadd.f32 %v463, %v1173
        %v1178 = vadd.f32 %v466, %v1174
        %v1179 = vmax.f32 %v1175, 0.0
        %v1180 = vmax.f32 %v1176, 0.0
        %v1181 = vmax.f32 %v1177, 0.0
        %v1182 = vmax.f32 %v1178, 0.0
        %1183 = vmatpush.msra.mxu0 0.0
        %1184 = vmatpush.msra.mxu0 0.0
        %1185 = vmatpush.msra.mxu0 0.0
        %1186 = vmatpush.msra.mxu0 0.0
        %1187 = vmatpush.msra.mxu0 0.0
        %1188 = vmatpush.msra.mxu0 0.0
        %1189 = vmatpush.msra.mxu0 0.0
        %1190 = vmatpush.msra.mxu0 0.0
        %1191 = vmatpush.msra.mxu0 0.0
        %1192 = vmatpush.msra.mxu0 0.0
        %1193 = vmatpush.msra.mxu0 0.0
        %1194 = vmatpush.msra.mxu0 0.0
        %1195 = vmatpush.msra.mxu0 %v1182
        %1196 = vmatpush.msra.mxu0 %v1181
        %1197 = vmatpush.msra.mxu0 %v1180
        %1198 = vmatpush.msra.mxu0 %v1179
        %1199 = vmatmul.f32.gmra.mxu0 %v534
        %v1200 = vpop.f32.mrf.mxu0
        %v1201 = vadd.f32 %v515, %v1200
        %1202 = vmatmul.f32.gmra.mxu0 %v537
        %v1203 = vpop.f32.mrf.mxu0
        %v1204 = vadd.f32 %v520, %v1203
        %1205 = vmatmul.f32.gmra.mxu0 %v540
        %v1206 = vpop.f32.mrf.mxu0
        %v1207 = vadd.f32 %v525, %v1206
        %1208 = vmatmul.f32.gmra.mxu0 %v543
        %v1209 = vpop.f32.mrf.mxu0
        %v1210 = vadd.f32 %v530, %v1209
        %1211 = vdwg.mxu0
        %v1212 = vmax.f32 %v1201, 0.0
        %v1213 = vmax.f32 %v1204, 0.0
        %v1214 = vmax.f32 %v1207, 0.0
        %v1215 = vmax.f32 %v1210, 0.0
        %v1216 = vmul.f32 %v581, %v1212
        %v1217 = vmul.f32 %v586, %v1213
        %v1218 = vmul.f32 %v591, %v1214
        %v1219 = vmul.f32 %v596, %v1215
        %v1220 = vadd.f32 %v1216, %v1217
        %v1221 = vadd.f32 %v1220, %v1218
        %v1222 = vadd.f32 %v1221, %v1219
        %v1223 = vrot.slane %v1222, 4
        %v1224 = vadd.f32 %v1222, %v1223
        %v1225 = vrot.slane %v1224, 2
        %v1226 = vadd.f32 %v1224, %v1225
        %v1227 = vrot.slane %v1226, 1
        %v1228 = vadd.f32 %v1226, %v1227
        %v1229 = vadd.f32 %v1228, %v616
        %v1230 = vand.u32 2147483647, %v1229
        %vm1231 = vcmp.lt.f32.partialorder %v1230, 0.0003
        %v1232 = vsel %vm1231, 1.0, %v1164
        %v1233 = vmul.f32 %v1229, 0.8
        %v1234 = vadd.f32 %v1170, %v1233
        %v1235 = vmax.f32 %v1234, 0.0
        %v1236 = vmin.f32 %v1235, 5.0
        %vm1237 = vcmp.gt.f32.partialorder %v1232, 0.0
        %v1238 = vsel %vm1237, %v1170, %v1236
        %v1239 = vmul.f32 %v1238, %v489
        %v1240 = vmul.f32 %v1238, %v492
        %v1241 = vmul.f32 %v1238, %v495
        %v1242 = vmul.f32 %v1238, %v498
        %v1243 = vadd.f32 %v457, %v1239
        %v1244 = vadd.f32 %v460, %v1240
        %v1245 = vadd.f32 %v463, %v1241
        %v1246 = vadd.f32 %v466, %v1242
        %v1247 = vmax.f32 %v1243, 0.0
        %v1248 = vmax.f32 %v1244, 0.0
        %v1249 = vmax.f32 %v1245, 0.0
        %v1250 = vmax.f32 %v1246, 0.0
        %1251 = vmatpush.msra.mxu0 0.0
        %1252 = vmatpush.msra.mxu0 0.0
        %1253 = vmatpush.msra.mxu0 0.0
        %1254 = vmatpush.msra.mxu0 0.0
        %1255 = vmatpush.msra.mxu0 0.0
        %1256 = vmatpush.msra.mxu0 0.0
        %1257 = vmatpush.msra.mxu0 0.0
        %1258 = vmatpush.msra.mxu0 0.0
        %1259 = vmatpush.msra.mxu0 0.0
        %1260 = vmatpush.msra.mxu0 0.0
        %1261 = vmatpush.msra.mxu0 0.0
        %1262 = vmatpush.msra.mxu0 0.0
        %1263 = vmatpush.msra.mxu0 %v1250
        %1264 = vmatpush.msra.mxu0 %v1249
        %1265 = vmatpush.msra.mxu0 %v1248
        %1266 = vmatpush.msra.mxu0 %v1247
        %1267 = vmatmul.f32.gmra.mxu0 %v534
        %v1268 = vpop.f32.mrf.mxu0
        %v1269 = vadd.f32 %v515, %v1268
        %1270 = vmatmul.f32.gmra.mxu0 %v537
        %v1271 = vpop.f32.mrf.mxu0
        %v1272 = vadd.f32 %v520, %v1271
        %1273 = vmatmul.f32.gmra.mxu0 %v540
        %v1274 = vpop.f32.mrf.mxu0
        %v1275 = vadd.f32 %v525, %v1274
        %1276 = vmatmul.f32.gmra.mxu0 %v543
        %v1277 = vpop.f32.mrf.mxu0
        %v1278 = vadd.f32 %v530, %v1277
        %1279 = vdwg.mxu0
        %v1280 = vmax.f32 %v1269, 0.0
        %v1281 = vmax.f32 %v1272, 0.0
        %v1282 = vmax.f32 %v1275, 0.0
        %v1283 = vmax.f32 %v1278, 0.0
        %v1284 = vmul.f32 %v581, %v1280
        %v1285 = vmul.f32 %v586, %v1281
        %v1286 = vmul.f32 %v591, %v1282
        %v1287 = vmul.f32 %v596, %v1283
        %v1288 = vadd.f32 %v1284, %v1285
        %v1289 = vadd.f32 %v1288, %v1286
        %v1290 = vadd.f32 %v1289, %v1287
        %v1291 = vrot.slane %v1290, 4
        %v1292 = vadd.f32 %v1290, %v1291
        %v1293 = vrot.slane %v1292, 2
        %v1294 = vadd.f32 %v1292, %v1293
        %v1295 = vrot.slane %v1294, 1
        %v1296 = vadd.f32 %v1294, %v1295
        %v1297 = vadd.f32 %v1296, %v616
        %v1298 = vand.u32 2147483647, %v1297
        %vm1299 = vcmp.lt.f32.partialorder %v1298, 0.0003
        %v1300 = vsel %vm1299, 1.0, %v1232
        %v1301 = vmul.f32 %v1297, 0.8
        %v1302 = vadd.f32 %v1238, %v1301
        %v1303 = vmax.f32 %v1302, 0.0
        %v1304 = vmin.f32 %v1303, 5.0
        %vm1305 = vcmp.gt.f32.partialorder %v1300, 0.0
        %v1306 = vsel %vm1305, %v1238, %v1304
        %v1307 = vmul.f32 %v1306, %v489
        %v1308 = vmul.f32 %v1306, %v492
        %v1309 = vmul.f32 %v1306, %v495
        %v1310 = vmul.f32 %v1306, %v498
        %v1311 = vadd.f32 %v457, %v1307
        %v1312 = vadd.f32 %v460, %v1308
        %v1313 = vadd.f32 %v463, %v1309
        %v1314 = vadd.f32 %v466, %v1310
        %v1315 = vmax.f32 %v1311, 0.0
        %v1316 = vmax.f32 %v1312, 0.0
        %v1317 = vmax.f32 %v1313, 0.0
        %v1318 = vmax.f32 %v1314, 0.0
        %1319 = vmatpush.msra.mxu0 0.0
        %1320 = vmatpush.msra.mxu0 0.0
        %1321 = vmatpush.msra.mxu0 0.0
        %1322 = vmatpush.msra.mxu0 0.0
        %1323 = vmatpush.msra.mxu0 0.0
        %1324 = vmatpush.msra.mxu0 0.0
        %1325 = vmatpush.msra.mxu0 0.0
        %1326 = vmatpush.msra.mxu0 0.0
        %1327 = vmatpush.msra.mxu0 0.0
        %1328 = vmatpush.msra.mxu0 0.0
        %1329 = vmatpush.msra.mxu0 0.0
        %1330 = vmatpush.msra.mxu0 0.0
        %1331 = vmatpush.msra.mxu0 %v1318
        %1332 = vmatpush.msra.mxu0 %v1317
        %1333 = vmatpush.msra.mxu0 %v1316
        %1334 = vmatpush.msra.mxu0 %v1315
        %1335 = vmatmul.f32.gmra.mxu0 %v534
        %v1336 = vpop.f32.mrf.mxu0
        %v1337 = vadd.f32 %v515, %v1336
        %1338 = vmatmul.f32.gmra.mxu0 %v537
        %v1339 = vpop.f32.mrf.mxu0
        %v1340 = vadd.f32 %v520, %v1339
        %1341 = vmatmul.f32.gmra.mxu0 %v540
        %v1342 = vpop.f32.mrf.mxu0
        %v1343 = vadd.f32 %v525, %v1342
        %1344 = vmatmul.f32.gmra.mxu0 %v543
        %v1345 = vpop.f32.mrf.mxu0
        %v1346 = vadd.f32 %v530, %v1345
        %1347 = vdwg.mxu0
        %v1348 = vmax.f32 %v1337, 0.0
        %v1349 = vmax.f32 %v1340, 0.0
        %v1350 = vmax.f32 %v1343, 0.0
        %v1351 = vmax.f32 %v1346, 0.0
        %v1352 = vmul.f32 %v581, %v1348
        %v1353 = vmul.f32 %v586, %v1349
        %v1354 = vmul.f32 %v591, %v1350
        %v1355 = vmul.f32 %v596, %v1351
        %v1356 = vadd.f32 %v1352, %v1353
        %v1357 = vadd.f32 %v1356, %v1354
        %v1358 = vadd.f32 %v1357, %v1355
        %v1359 = vrot.slane %v1358, 4
        %v1360 = vadd.f32 %v1358, %v1359
        %v1361 = vrot.slane %v1360, 2
        %v1362 = vadd.f32 %v1360, %v1361
        %v1363 = vrot.slane %v1362, 1
        %v1364 = vadd.f32 %v1362, %v1363
        %v1365 = vadd.f32 %v1364, %v616
        %v1366 = vand.u32 2147483647, %v1365
        %vm1367 = vcmp.lt.f32.partialorder %v1366, 0.0003
        %v1368 = vsel %vm1367, 1.0, %v1300
        %v1369 = vmul.f32 %v1365, 0.8
        %v1370 = vadd.f32 %v1306, %v1369
        %v1371 = vmax.f32 %v1370, 0.0
        %v1372 = vmin.f32 %v1371, 5.0
        %vm1373 = vcmp.gt.f32.partialorder %v1368, 0.0
        %v1374 = vsel %vm1373, %v1306, %v1372
        %v1375 = vmul.f32 %v1374, %v489
        %v1376 = vmul.f32 %v1374, %v492
        %v1377 = vmul.f32 %v1374, %v495
        %v1378 = vmul.f32 %v1374, %v498
        %v1379 = vadd.f32 %v457, %v1375
        %v1380 = vadd.f32 %v460, %v1376
        %v1381 = vadd.f32 %v463, %v1377
        %v1382 = vadd.f32 %v466, %v1378
        %v1383 = vmax.f32 %v1379, 0.0
        %v1384 = vmax.f32 %v1380, 0.0
        %v1385 = vmax.f32 %v1381, 0.0
        %v1386 = vmax.f32 %v1382, 0.0
        %1387 = vmatpush.msra.mxu0 0.0
        %1388 = vmatpush.msra.mxu0 0.0
        %1389 = vmatpush.msra.mxu0 0.0
        %1390 = vmatpush.msra.mxu0 0.0
        %1391 = vmatpush.msra.mxu0 0.0
        %1392 = vmatpush.msra.mxu0 0.0
        %1393 = vmatpush.msra.mxu0 0.0
        %1394 = vmatpush.msra.mxu0 0.0
        %1395 = vmatpush.msra.mxu0 0.0
        %1396 = vmatpush.msra.mxu0 0.0
        %1397 = vmatpush.msra.mxu0 0.0
        %1398 = vmatpush.msra.mxu0 0.0
        %1399 = vmatpush.msra.mxu0 %v1386
        %1400 = vmatpush.msra.mxu0 %v1385
        %1401 = vmatpush.msra.mxu0 %v1384
        %1402 = vmatpush.msra.mxu0 %v1383
        %1403 = vmatmul.f32.gmra.mxu0 %v534
        %v1404 = vpop.f32.mrf.mxu0
        %v1405 = vadd.f32 %v515, %v1404
        %1406 = vmatmul.f32.gmra.mxu0 %v537
        %v1407 = vpop.f32.mrf.mxu0
        %v1408 = vadd.f32 %v520, %v1407
        %1409 = vmatmul.f32.gmra.mxu0 %v540
        %v1410 = vpop.f32.mrf.mxu0
        %v1411 = vadd.f32 %v525, %v1410
        %1412 = vmatmul.f32.gmra.mxu0 %v543
        %v1413 = vpop.f32.mrf.mxu0
        %v1414 = vadd.f32 %v530, %v1413
        %1415 = vdwg.mxu0
        %v1416 = vmax.f32 %v1405, 0.0
        %v1417 = vmax.f32 %v1408, 0.0
        %v1418 = vmax.f32 %v1411, 0.0
        %v1419 = vmax.f32 %v1414, 0.0
        %v1420 = vmul.f32 %v581, %v1416
        %v1421 = vmul.f32 %v586, %v1417
        %v1422 = vmul.f32 %v591, %v1418
        %v1423 = vmul.f32 %v596, %v1419
        %v1424 = vadd.f32 %v1420, %v1421
        %v1425 = vadd.f32 %v1424, %v1422
        %v1426 = vadd.f32 %v1425, %v1423
        %v1427 = vrot.slane %v1426, 4
        %v1428 = vadd.f32 %v1426, %v1427
        %v1429 = vrot.slane %v1428, 2
        %v1430 = vadd.f32 %v1428, %v1429
        %v1431 = vrot.slane %v1430, 1
        %v1432 = vadd.f32 %v1430, %v1431
        %v1433 = vadd.f32 %v1432, %v616
        %v1434 = vand.u32 2147483647, %v1433
        %vm1435 = vcmp.lt.f32.partialorder %v1434, 0.0003
        %v1436 = vsel %vm1435, 1.0, %v1368
        %v1437 = vmul.f32 %v1433, 0.8
        %v1438 = vadd.f32 %v1374, %v1437
        %v1439 = vmax.f32 %v1438, 0.0
        %v1440 = vmin.f32 %v1439, 5.0
        %vm1441 = vcmp.gt.f32.partialorder %v1436, 0.0
        %v1442 = vsel %vm1441, %v1374, %v1440
        %v1443 = vmul.f32 %v1442, %v489
        %v1444 = vmul.f32 %v1442, %v492
        %v1445 = vmul.f32 %v1442, %v495
        %v1446 = vmul.f32 %v1442, %v498
        %v1447 = vadd.f32 %v457, %v1443
        %v1448 = vadd.f32 %v460, %v1444
        %v1449 = vadd.f32 %v463, %v1445
        %v1450 = vadd.f32 %v466, %v1446
        %v1451 = vmax.f32 %v1447, 0.0
        %v1452 = vmax.f32 %v1448, 0.0
        %v1453 = vmax.f32 %v1449, 0.0
        %v1454 = vmax.f32 %v1450, 0.0
        %1455 = vmatpush.msra.mxu0 0.0
        %1456 = vmatpush.msra.mxu0 0.0
        %1457 = vmatpush.msra.mxu0 0.0
        %1458 = vmatpush.msra.mxu0 0.0
        %1459 = vmatpush.msra.mxu0 0.0
        %1460 = vmatpush.msra.mxu0 0.0
        %1461 = vmatpush.msra.mxu0 0.0
        %1462 = vmatpush.msra.mxu0 0.0
        %1463 = vmatpush.msra.mxu0 0.0
        %1464 = vmatpush.msra.mxu0 0.0
        %1465 = vmatpush.msra.mxu0 0.0
        %1466 = vmatpush.msra.mxu0 0.0
        %1467 = vmatpush.msra.mxu0 %v1454
        %1468 = vmatpush.msra.mxu0 %v1453
        %1469 = vmatpush.msra.mxu0 %v1452
        %1470 = vmatpush.msra.mxu0 %v1451
        %1471 = vmatmul.f32.gmra.mxu0 %v534
        %v1472 = vpop.f32.mrf.mxu0
        %v1473 = vadd.f32 %v515, %v1472
        %1474 = vmatmul.f32.gmra.mxu0 %v537
        %v1475 = vpop.f32.mrf.mxu0
        %v1476 = vadd.f32 %v520, %v1475
        %1477 = vmatmul.f32.gmra.mxu0 %v540
        %v1478 = vpop.f32.mrf.mxu0
        %v1479 = vadd.f32 %v525, %v1478
        %1480 = vmatmul.f32.gmra.mxu0 %v543
        %v1481 = vpop.f32.mrf.mxu0
        %v1482 = vadd.f32 %v530, %v1481
        %1483 = vdwg.mxu0
        %v1484 = vmax.f32 %v1473, 0.0
        %v1485 = vmax.f32 %v1476, 0.0
        %v1486 = vmax.f32 %v1479, 0.0
        %v1487 = vmax.f32 %v1482, 0.0
        %v1488 = vmul.f32 %v581, %v1484
        %v1489 = vmul.f32 %v586, %v1485
        %v1490 = vmul.f32 %v591, %v1486
        %v1491 = vmul.f32 %v596, %v1487
        %v1492 = vadd.f32 %v1488, %v1489
        %v1493 = vadd.f32 %v1492, %v1490
        %v1494 = vadd.f32 %v1493, %v1491
        %v1495 = vrot.slane %v1494, 4
        %v1496 = vadd.f32 %v1494, %v1495
        %v1497 = vrot.slane %v1496, 2
        %v1498 = vadd.f32 %v1496, %v1497
        %v1499 = vrot.slane %v1498, 1
        %v1500 = vadd.f32 %v1498, %v1499
        %v1501 = vadd.f32 %v1500, %v616
        %v1502 = vand.u32 2147483647, %v1501
        %vm1503 = vcmp.lt.f32.partialorder %v1502, 0.0003
        %v1504 = vsel %vm1503, 1.0, %v1436
        %v1505 = vmul.f32 %v1501, 0.8
        %v1506 = vadd.f32 %v1442, %v1505
        %v1507 = vmax.f32 %v1506, 0.0
        %v1508 = vmin.f32 %v1507, 5.0
        %vm1509 = vcmp.gt.f32.partialorder %v1504, 0.0
        %v1510 = vsel %vm1509, %v1442, %v1508
        %v1511 = vmul.f32 %v1510, %v489
        %v1512 = vmul.f32 %v1510, %v492
        %v1513 = vmul.f32 %v1510, %v495
        %v1514 = vmul.f32 %v1510, %v498
        %v1515 = vadd.f32 %v457, %v1511
        %v1516 = vadd.f32 %v460, %v1512
        %v1517 = vadd.f32 %v463, %v1513
        %v1518 = vadd.f32 %v466, %v1514
        %v1519 = vmax.f32 %v1515, 0.0
        %v1520 = vmax.f32 %v1516, 0.0
        %v1521 = vmax.f32 %v1517, 0.0
        %v1522 = vmax.f32 %v1518, 0.0
        %1523 = vmatpush.msra.mxu0 0.0
        %1524 = vmatpush.msra.mxu0 0.0
        %1525 = vmatpush.msra.mxu0 0.0
        %1526 = vmatpush.msra.mxu0 0.0
        %1527 = vmatpush.msra.mxu0 0.0
        %1528 = vmatpush.msra.mxu0 0.0
        %1529 = vmatpush.msra.mxu0 0.0
        %1530 = vmatpush.msra.mxu0 0.0
        %1531 = vmatpush.msra.mxu0 0.0
        %1532 = vmatpush.msra.mxu0 0.0
        %1533 = vmatpush.msra.mxu0 0.0
        %1534 = vmatpush.msra.mxu0 0.0
        %1535 = vmatpush.msra.mxu0 %v1522
        %1536 = vmatpush.msra.mxu0 %v1521
        %1537 = vmatpush.msra.mxu0 %v1520
        %1538 = vmatpush.msra.mxu0 %v1519
        %1539 = vmatmul.f32.gmra.mxu0 %v534
        %v1540 = vpop.f32.mrf.mxu0
        %v1541 = vadd.f32 %v515, %v1540
        %1542 = vmatmul.f32.gmra.mxu0 %v537
        %v1543 = vpop.f32.mrf.mxu0
        %v1544 = vadd.f32 %v520, %v1543
        %1545 = vmatmul.f32.gmra.mxu0 %v540
        %v1546 = vpop.f32.mrf.mxu0
        %v1547 = vadd.f32 %v525, %v1546
        %1548 = vmatmul.f32.gmra.mxu0 %v543
        %v1549 = vpop.f32.mrf.mxu0
        %v1550 = vadd.f32 %v530, %v1549
        %1551 = vdwg.mxu0
        %v1552 = vmax.f32 %v1541, 0.0
        %v1553 = vmax.f32 %v1544, 0.0
        %v1554 = vmax.f32 %v1547, 0.0
        %v1555 = vmax.f32 %v1550, 0.0
        %v1556 = vmul.f32 %v581, %v1552
        %v1557 = vmul.f32 %v586, %v1553
        %v1558 = vmul.f32 %v591, %v1554
        %v1559 = vmul.f32 %v596, %v1555
        %v1560 = vadd.f32 %v1556, %v1557
        %v1561 = vadd.f32 %v1560, %v1558
        %v1562 = vadd.f32 %v1561, %v1559
        %v1563 = vrot.slane %v1562, 4
        %v1564 = vadd.f32 %v1562, %v1563
        %v1565 = vrot.slane %v1564, 2
        %v1566 = vadd.f32 %v1564, %v1565
        %v1567 = vrot.slane %v1566, 1
        %v1568 = vadd.f32 %v1566, %v1567
        %v1569 = vadd.f32 %v1568, %v616
        %v1570 = vand.u32 2147483647, %v1569
        %vm1571 = vcmp.lt.f32.partialorder %v1570, 0.0003
        %v1572 = vsel %vm1571, 1.0, %v1504
        %v1573 = vmul.f32 %v1569, 0.8
        %v1574 = vadd.f32 %v1510, %v1573
        %v1575 = vmax.f32 %v1574, 0.0
        %v1576 = vmin.f32 %v1575, 5.0
        %vm1577 = vcmp.gt.f32.partialorder %v1572, 0.0
        %v1578 = vsel %vm1577, %v1510, %v1576
        %v1579 = vmul.f32 %v1578, %v489
        %v1580 = vmul.f32 %v1578, %v492
        %v1581 = vmul.f32 %v1578, %v495
        %v1582 = vmul.f32 %v1578, %v498
        %v1583 = vadd.f32 %v457, %v1579
        %v1584 = vadd.f32 %v460, %v1580
        %v1585 = vadd.f32 %v463, %v1581
        %v1586 = vadd.f32 %v466, %v1582
        %v1587 = vmax.f32 %v1583, 0.0
        %v1588 = vmax.f32 %v1584, 0.0
        %v1589 = vmax.f32 %v1585, 0.0
        %v1590 = vmax.f32 %v1586, 0.0
        %1591 = vmatpush.msra.mxu0 0.0
        %1592 = vmatpush.msra.mxu0 0.0
        %1593 = vmatpush.msra.mxu0 0.0
        %1594 = vmatpush.msra.mxu0 0.0
        %1595 = vmatpush.msra.mxu0 0.0
        %1596 = vmatpush.msra.mxu0 0.0
        %1597 = vmatpush.msra.mxu0 0.0
        %1598 = vmatpush.msra.mxu0 0.0
        %1599 = vmatpush.msra.mxu0 0.0
        %1600 = vmatpush.msra.mxu0 0.0
        %1601 = vmatpush.msra.mxu0 0.0
        %1602 = vmatpush.msra.mxu0 0.0
        %1603 = vmatpush.msra.mxu0 %v1590
        %1604 = vmatpush.msra.mxu0 %v1589
        %1605 = vmatpush.msra.mxu0 %v1588
        %1606 = vmatpush.msra.mxu0 %v1587
        %1607 = vmatmul.f32.gmra.mxu0 %v534
        %v1608 = vpop.f32.mrf.mxu0
        %v1609 = vadd.f32 %v515, %v1608
        %1610 = vmatmul.f32.gmra.mxu0 %v537
        %v1611 = vpop.f32.mrf.mxu0
        %v1612 = vadd.f32 %v520, %v1611
        %1613 = vmatmul.f32.gmra.mxu0 %v540
        %v1614 = vpop.f32.mrf.mxu0
        %v1615 = vadd.f32 %v525, %v1614
        %1616 = vmatmul.f32.gmra.mxu0 %v543
        %v1617 = vpop.f32.mrf.mxu0
        %v1618 = vadd.f32 %v530, %v1617
        %1619 = vdwg.mxu0
        %v1620 = vmax.f32 %v1609, 0.0
        %v1621 = vmax.f32 %v1612, 0.0
        %v1622 = vmax.f32 %v1615, 0.0
        %v1623 = vmax.f32 %v1618, 0.0
        %v1624 = vmul.f32 %v581, %v1620
        %v1625 = vmul.f32 %v586, %v1621
        %v1626 = vmul.f32 %v591, %v1622
        %v1627 = vmul.f32 %v596, %v1623
        %v1628 = vadd.f32 %v1624, %v1625
        %v1629 = vadd.f32 %v1628, %v1626
        %v1630 = vadd.f32 %v1629, %v1627
        %v1631 = vrot.slane %v1630, 4
        %v1632 = vadd.f32 %v1630, %v1631
        %v1633 = vrot.slane %v1632, 2
        %v1634 = vadd.f32 %v1632, %v1633
        %v1635 = vrot.slane %v1634, 1
        %v1636 = vadd.f32 %v1634, %v1635
        %v1637 = vadd.f32 %v1636, %v616
        %v1638 = vand.u32 2147483647, %v1637
        %vm1639 = vcmp.lt.f32.partialorder %v1638, 0.0003
        %v1640 = vsel %vm1639, 1.0, %v1572
        %v1641 = vmul.f32 %v1637, 0.8
        %v1642 = vadd.f32 %v1578, %v1641
        %v1643 = vmax.f32 %v1642, 0.0
        %v1644 = vmin.f32 %v1643, 5.0
        %vm1645 = vcmp.gt.f32.partialorder %v1640, 0.0
        %v1646 = vsel %vm1645, %v1578, %v1644
        %v1647 = vmul.f32 %v1646, %v375
        %v1648 = vadd.f32 %v374, %v1647
        %v1649 = vmul.f32 %v1646, %v489
        %v1650 = vmul.f32 %v1646, %v492
        %v1651 = vmul.f32 %v1646, %v495
        %v1652 = vmul.f32 %v1646, %v498
        %v1653 = vadd.f32 %v457, %v1649
        %v1654 = vadd.f32 %v460, %v1650
        %v1655 = vadd.f32 %v463, %v1651
        %v1656 = vadd.f32 %v466, %v1652
        %v1657 = vmax.f32 %v1653, 0.0
        %v1658 = vmax.f32 %v1654, 0.0
        %v1659 = vmax.f32 %v1655, 0.0
        %v1660 = vmax.f32 %v1656, 0.0
        %1661 = vmatpush.msra.mxu0 0.0
        %1662 = vmatpush.msra.mxu0 0.0
        %1663 = vmatpush.msra.mxu0 0.0
        %1664 = vmatpush.msra.mxu0 0.0
        %1665 = vmatpush.msra.mxu0 0.0
        %1666 = vmatpush.msra.mxu0 0.0
        %1667 = vmatpush.msra.mxu0 0.0
        %1668 = vmatpush.msra.mxu0 0.0
        %1669 = vmatpush.msra.mxu0 0.0
        %1670 = vmatpush.msra.mxu0 0.0
        %1671 = vmatpush.msra.mxu0 0.0
        %1672 = vmatpush.msra.mxu0 0.0
        %1673 = vmatpush.msra.mxu0 %v1660
        %1674 = vmatpush.msra.mxu0 %v1659
        %1675 = vmatpush.msra.mxu0 %v1658
        %1676 = vmatpush.msra.mxu0 %v1657
        %1677 = vmatmul.f32.gmra.mxu0 %v534
        %v1678 = vpop.f32.mrf.mxu0
        %v1679 = vadd.f32 %v515, %v1678
        %1680 = vmatmul.f32.gmra.mxu0 %v537
        %v1681 = vpop.f32.mrf.mxu0
        %v1682 = vadd.f32 %v520, %v1681
        %1683 = vmatmul.f32.gmra.mxu0 %v540
        %v1684 = vpop.f32.mrf.mxu0
        %v1685 = vadd.f32 %v525, %v1684
        %1686 = vmatmul.f32.gmra.mxu0 %v543
        %v1687 = vpop.f32.mrf.mxu0
        %v1688 = vadd.f32 %v530, %v1687
        %1689 = vdwg.mxu0
        %vm1690 = vcmp.gt.f32.partialorder %v1653, 0.0
        %vm1691 = vcmp.gt.f32.partialorder %v1654, 0.0
        %vm1692 = vcmp.gt.f32.partialorder %v1655, 0.0
        %vm1693 = vcmp.gt.f32.partialorder %v1656, 0.0
        %vm1694 = vcmp.gt.f32.partialorder %v1679, 0.0
        %vm1695 = vcmp.gt.f32.partialorder %v1682, 0.0
        %vm1696 = vcmp.gt.f32.partialorder %v1685, 0.0
        %vm1697 = vcmp.gt.f32.partialorder %v1688, 0.0
        %v1698 = vsel %vm1694, %v581, 0.0
        %v1699 = vsel %vm1695, %v586, 0.0
        %v1700 = vsel %vm1696, %v591, 0.0
        %v1701 = vsel %vm1697, %v596, 0.0
        %v1703 = vsel %vm532, %v389, 0
        %v1706 = vsel %vm532, %v390, 0
        %v1709 = vsel %vm532, %v391, 0
        %v1712 = vsel %vm532, %v392, 0
        %1714 = vmatpush.msra.mxu0 0.0
        %1715 = vmatpush.msra.mxu0 0.0
        %1716 = vmatpush.msra.mxu0 0.0
        %1717 = vmatpush.msra.mxu0 0.0
        %1718 = vmatpush.msra.mxu0 0.0
        %1719 = vmatpush.msra.mxu0 0.0
        %1720 = vmatpush.msra.mxu0 0.0
        %1721 = vmatpush.msra.mxu0 0.0
        %1722 = vmatpush.msra.mxu0 0.0
        %1723 = vmatpush.msra.mxu0 0.0
        %1724 = vmatpush.msra.mxu0 0.0
        %1725 = vmatpush.msra.mxu0 0.0
        %1726 = vmatpush.msra.mxu0 %v1701
        %1727 = vmatpush.msra.mxu0 %v1700
        %1728 = vmatpush.msra.mxu0 %v1699
        %1729 = vmatpush.msra.mxu0 %v1698
        %1730 = vmatmul.f32.gmra.mxu0 %v1703
        %v1731 = vpop.f32.mrf.mxu0
        %v1732 = vadd.f32 0.0, %v1731
        %1733 = vmatmul.f32.gmra.mxu0 %v1706
        %v1734 = vpop.f32.mrf.mxu0
        %v1735 = vadd.f32 0.0, %v1734
        %1736 = vmatmul.f32.gmra.mxu0 %v1709
        %v1737 = vpop.f32.mrf.mxu0
        %v1738 = vadd.f32 0.0, %v1737
        %1739 = vmatmul.f32.gmra.mxu0 %v1712
        %v1740 = vpop.f32.mrf.mxu0
        %v1741 = vadd.f32 0.0, %v1740
        %1742 = vdwg.mxu0
        %v1743 = vsel %vm1690, %v1732, 0.0
        %v1744 = vsel %vm1691, %v1735, 0.0
        %v1745 = vsel %vm1692, %v1738, 0.0
        %v1746 = vsel %vm1693, %v1741, 0.0
        %v1748 = vsel %vm532, %v380, 0
        %1750 = vmatpush.msra.mxu0 0.0
        %1751 = vmatpush.msra.mxu0 0.0
        %1752 = vmatpush.msra.mxu0 0.0
        %1753 = vmatpush.msra.mxu0 0.0
        %1754 = vmatpush.msra.mxu0 0.0
        %1755 = vmatpush.msra.mxu0 0.0
        %1756 = vmatpush.msra.mxu0 0.0
        %1757 = vmatpush.msra.mxu0 0.0
        %1758 = vmatpush.msra.mxu0 0.0
        %1759 = vmatpush.msra.mxu0 0.0
        %1760 = vmatpush.msra.mxu0 0.0
        %1761 = vmatpush.msra.mxu0 0.0
        %1762 = vmatpush.msra.mxu0 %v1746
        %1763 = vmatpush.msra.mxu0 %v1745
        %1764 = vmatpush.msra.mxu0 %v1744
        %1765 = vmatpush.msra.mxu0 %v1743
        %1766 = vmatmul.f32.gmra.mxu0 %v1748
        %v1767 = vpop.f32.mrf.mxu0
        %v1768 = vadd.f32 0.0, %v1767
        %1769 = vdwg.mxu0
        %v1770 = vmul.f32 %v1768, %v1768
        %v1771 = vsel %vm435, %v1770, 0.0
        %v1772 = vrot.slane %v1771, 4
        %v1773 = vadd.f32 %v1771, %v1772
        %v1774 = vrot.slane %v1773, 2
        %v1775 = vadd.f32 %v1773, %v1774
        %v1776 = vrot.slane %v1775, 1
        %v1777 = vadd.f32 %v1775, %v1776
        %v1778 = vadd.f32 %v1777, 1e-12
        %v1779 = vrsqrt.pop %v1778
        %v1780 = vmul.f32 %v1779, %v1778
        %v1781 = vmul.f32 %v1780, %v1779
        %v1782 = vmul.f32 0.5, %v1781
        %v1783 = vsub.f32 1.5, %v1782
        %v1784 = vmul.f32 %v1779, %v1783
        %vm1785 = vweird.f32 %v1778
        %vm1786 = vweird.f32 %v1779
        %vm1787 = vmor %vm1785, %vm1786
        %v1788 = vsel %vm1787, %v1779, %v1784
        %1789 = vst [vmem:[%s365] sm:$0x7] %v1648
        %v1790 = vmul.f32 %v1768, %v1788
        %1791 = vst [vmem:[%s365 + $0x3] sm:$0x7] %v1790
        %1792 = vst [vmem:[%s365 + $0x6] sm:$0x1] %v1646
        %1793 = vst [vmem:[%s365 + $0x7] sm:$0x1] %v1640
        %s1794 = sand.u32 %s254, 1
        %s1795 = scalar_lea.sflag [#allocation4], %s1794
        %s1796 = sand.u32 %s254, 1
        %s1797 = smul.addr %s1796, 8
        %s1798 = scalar_lea.vmem [#allocation3], %s1797
        // Predicated region
        $region61: #{render_pallas.1} parent=59 // pred_check
          %p1799 = pneg %p264
        $region62: #{render_pallas.1} parent=59 // pred_check_branch
          %1801 = sbr.rel (%p1799) target = $region64
        $region63: #{render_pallas.1} parent=59 // pred_region
          %1803 = vsyncadd %s1795, 0
          %s1804 = smul.addr %s26, 8
          %s1805 = scalar_lea.hbm %s10, %s1804
          %s1807 = sshll.u32 %s1798, 4
          %s1808 = int_to_ptr.vmem [resolvable:$true] %s1807
          %s1809 = sshll.u32 %s1805, 4
          %s1810 = int_to_ptr.hbm [resolvable:$true] %s1809
          %1812 = dma.vmem_to_hbm [thread:$0]  %s1808, 128, %s1810, %s1795
        $region64: #{render_pallas.1} parent=59 // pred_fallthru
          _
      $region60: #{render_pallas.1} parent=5 // pred_fallthru
        _
      %p1813 = scmp.le.s32.totalorder 2, %s21
      // Predicated region
      $region65: #{render_pallas.1} parent=5 // pred_check
        %p1814 = pneg %p1813
      $region66: #{render_pallas.1} parent=5 // pred_check_branch
        %1816 = sbr.rel (%p1814) target = $region68
      $region67: #{render_pallas.1} parent=5 // pred_region
        %s1817 = ssub.s32 %s21, 2
        // Predicated region
        $region69: #{render_pallas.1} parent=67 // pred_check
          %p1818 = pneg %p270
        $region70: #{render_pallas.1} parent=67 // pred_check_branch
          %1820 = sbr.rel (%p1818) target = $region72
        $region71: #{render_pallas.1} parent=67 // pred_region
          %s1821 = sand.u32 %s255, 1
          %s1822 = scalar_lea.sflag [#allocation4], %s1821
          %s1823 = sand.u32 %s255, 1
          %s1824 = smul.addr %s1823, 8
          %s1825 = scalar_lea.vmem [#allocation3], %s1824
          %1827 = dma.done %s1822, 128
        $region72: #{render_pallas.1} parent=67 // pred_fallthru
          _
      $region68: #{render_pallas.1} parent=5 // pred_fallthru
        _
    $region6: #{render_pallas.1} parent=1 // loop_footer
      %s25 = sadd.s32 1, %s21
    $region7: #{render_pallas.1} parent=1 // loop_footer_branch
      %20 = sbr.rel target = $region3
    $region8: #{render_pallas.1} parent=1 // loop_exit
      _
    %1828 = vsyncpa [#allocation4], 1
    %s1829 = scalar_lea.sflag [#allocation4], 1
    %1830 = vsyncpa %s1829, 1

</llo_original>
